<compile_context>
chip_gen: v6e
topology: v6e:2x2x1
jax: 0.10.0
libtpu: 0.0.40
codegen_flags: <defaults>
</compile_context>

<pallas_src>
import functools

import numpy as np
import jax
import jax.numpy as jnp
from jax.experimental import pallas as pl
from jax.experimental.pallas import tpu as pltpu


# ----------------------------------------------------------------------------
# Exact-gelu erf built only from ops with guaranteed Mosaic lowerings.
# Abramowitz & Stegun 7.1.26, |error| <= 1.5e-7 (~ f32 machine eps).
# TODO(synk): switch to lax.erf if/when an erf lowering is guaranteed in Mosaic.
# ----------------------------------------------------------------------------
def _erf(x):
    p = 0.3275911
    a1, a2, a3, a4, a5 = (0.254829592, -0.284496736, 1.421413741,
                          -1.453152027, 1.061405429)
    ax = jnp.abs(x)
    t = 1.0 / (1.0 + p * ax)
    poly = ((((a5 * t + a4) * t + a3) * t + a2) * t + a1) * t
    y = 1.0 - poly * jnp.exp(-ax * ax)
    return jnp.where(x >= 0.0, y, -y)


def _gelu_exact(x):
    # F.gelu default (exact erf form): 0.5 * x * (1 + erf(x / sqrt(2)))
    return 0.5 * x * (1.0 + _erf(x * 0.7071067811865476))


# ----------------------------------------------------------------------------
# Fused EncoderLayer kernel
# ----------------------------------------------------------------------------
def _encoder_layer_kernel(x_ref, wqkv_ref, bqkv_ref, wo_ref, bo_ref,
                          g1_ref, be1_ref, w1_ref, b1_ref, w2_ref, b2_ref,
                          g2_ref, be2_ref,
                          out_ref, attn_ref, ctx_ref,
                          *, B, S, D, n_head, d_head, scale, eps):
    HD = n_head * d_head
    x3 = x_ref[...]                                # (B, S, D)
    x2 = x3.reshape(B * S, D)                      # merge leading dims (last dim unchanged)

    # ---- fused Q/K/V projection: one matmul instead of three ----
    qkv = jnp.dot(x2, wqkv_ref[...], preferred_element_type=jnp.float32) + bqkv_ref[...]
    q = qkv[:, 0 * HD:1 * HD].reshape(B, S, HD)
    k = qkv[:, 1 * HD:2 * HD].reshape(B, S, HD)
    v = qkv[:, 2 * HD:3 * HD].reshape(B, S, HD)

    # ---- scaled dot-product attention: batched over B, static unroll over heads ----
    probs, ctxs = [], []
    for h in range(n_head):                        # n_head is small & static
        sl = slice(h * d_head, (h + 1) * d_head)
        qh, kh, vh = q[:, :, sl], k[:, :, sl], v[:, :, sl]          # (B, S, dh)
        s = jnp.einsum('bqd,bkd->bqk', qh, kh,
                       preferred_element_type=jnp.float32) * scale  # (B, S, S)
        s = s - jnp.max(s, axis=-1, keepdims=True)
        e = jnp.exp(s)
        inv = pl.reciprocal(jnp.sum(e, axis=-1, keepdims=True), approx=True)  # EUP slot
        prob = e * inv
        probs.append(prob)
        ctxs.append(jnp.einsum('bqk,bkd->bqd', prob, vh,
                               preferred_element_type=jnp.float32))           # (B, S, dh)

    # lane-dense single stores (no per-head masked partial stores)
    attn_ref[...] = jnp.concatenate(probs, axis=-1)                # (B, S, n_head*S)
    ctx3 = jnp.concatenate(ctxs, axis=-1)                          # (B, S, HD) == `context`
    ctx_ref[...] = ctx3

    # ---- attention output projection + residual + LayerNorm1 (all in vregs) ----
    ctx2 = ctx3.reshape(B * S, HD)
    att = jnp.dot(ctx2, wo_ref[...], preferred_element_type=jnp.float32) + bo_ref[...]
    h1 = x2 + att
    mu1 = jnp.mean(h1, axis=-1, keepdims=True)
    c1 = h1 - mu1
    v1 = jnp.mean(c1 * c1, axis=-1, keepdims=True)                 # biased var, like nn.LayerNorm
    ln1 = c1 * jax.lax.rsqrt(v1 + eps) * g1_ref[...] + be1_ref[...]

    # ---- FFN: linear1 -> exact gelu -> linear2; 4*D-wide intermediate never hits HBM ----
    f1 = jnp.dot(ln1, w1_ref[...], preferred_element_type=jnp.float32) + b1_ref[...]
    f1 = _gelu_exact(f1)
    f2 = jnp.dot(f1, w2_ref[...], preferred_element_type=jnp.float32) + b2_ref[...]

    # ---- residual + LayerNorm2 ----
    h2 = f2 + ln1
    mu2 = jnp.mean(h2, axis=-1, keepdims=True)
    c2 = h2 - mu2
    v2 = jnp.mean(c2 * c2, axis=-1, keepdims=True)
    ln2 = c2 * jax.lax.rsqrt(v2 + eps) * g2_ref[...] + be2_ref[...]

    out_ref[...] = ln2.reshape(B, S, D)


def encoder_layer_forward(params, x, *, n_head, d_head, eps):
    """Pallas port of EncoderLayer.forward: returns (ffn_outputs, attn_prob, context)."""
    B, S, D = x.shape
    HD = n_head * d_head
    kernel = functools.partial(
        _encoder_layer_kernel, B=B, S=S, D=D, n_head=n_head, d_head=d_head,
        scale=1.0 / float(d_head) ** 0.5, eps=float(eps))

    vmem = pl.BlockSpec(memory_space=pltpu.MemorySpace.VMEM)   # whole array resident in VMEM
    out, attn_cat, ctx = pl.pallas_call(
        kernel,
        in_specs=[vmem] * 13,
        out_specs=(vmem, vmem, vmem),
        out_shape=(
            jax.ShapeDtypeStruct((B, S, D), jnp.float32),           # ffn_outputs
            jax.ShapeDtypeStruct((B, S, n_head * S), jnp.float32),  # attn probs, lane-dense
            jax.ShapeDtypeStruct((B, S, HD), jnp.float32),          # context
        ),
    )(x,
      params["wqkv"], params["bqkv"], params["wo"], params["bo"],
      params["ln1_g"], params["ln1_b"],
      params["w1"], params["b1"], params["w2"], params["b2"],
      params["ln2_g"], params["ln2_b"])

    # free wrapper-side relayout to the module's (B, n_head, S, S) attn_prob shape
    attn_prob = attn_cat.reshape(B, S, n_head, S).transpose(0, 2, 1, 3)
    return out, attn_prob, ctx


# ----------------------------------------------------------------------------
# Parameter init (torch nn.Linear-style uniform bounds); weights stored
# pre-transposed to (in, out) and Q/K/V pre-fused once, so no per-call transposes.
# ----------------------------------------------------------------------------
def init_encoder_layer_params(key, d_model, n_head, d_head):
    HD = n_head * d_head
    ks = jax.random.split(key, 6)

    def linear(k, in_f, out_f):
        kw, kb = jax.random.split(k)
        bound = 1.0 / float(np.sqrt(in_f))
        w = jax.random.uniform(kw, (out_f, in_f), jnp.float32, -bound, bound)
        b = jax.random.uniform(kb, (out_f,), jnp.float32, -bound, bound)
        return w, b

    wq, bq = linear(ks[0], d_model, HD)
    wk, bk = linear(ks[1], d_model, HD)
    wv, bv = linear(ks[2], d_model, HD)
    wo, bo = linear(ks[3], HD, d_model)
    w1, b1 = linear(ks[4], d_model, 4 * d_model)
    w2, b2 = linear(ks[5], 4 * d_model, d_model)

    return {
        "wqkv": jnp.concatenate([wq.T, wk.T, wv.T], axis=1),        # (D, 3*HD)
        "bqkv": jnp.concatenate([bq, bk, bv]).reshape(1, 3 * HD),
        "wo": wo.T, "bo": bo.reshape(1, d_model),
        "w1": w1.T, "b1": b1.reshape(1, 4 * d_model),
        "w2": w2.T, "b2": b2.reshape(1, d_model),
        "ln1_g": jnp.ones((1, d_model), jnp.float32),
        "ln1_b": jnp.zeros((1, d_model), jnp.float32),
        "ln2_g": jnp.ones((1, d_model), jnp.float32),
        "ln2_b": jnp.zeros((1, d_model), jnp.float32),
    }


# ----------------------------------------------------------------------------
# Pure-JAX reference (mirrors the torch module) for a tolerance check.
# ----------------------------------------------------------------------------
def encoder_layer_reference(params, x, *, n_head, d_head, eps):
    B, S, D = x.shape
    HD = n_head * d_head
    hp = jax.lax.Precision.HIGHEST

    qkv = jnp.einsum('bsd,df->bsf', x, params["wqkv"], precision=hp) + params["bqkv"][0]
    q, k, v = jnp.split(qkv, 3, axis=-1)

    def heads(t):
        return t.reshape(B, S, n_head, d_head).transpose(0, 2, 1, 3)

    qh, kh, vh = heads(q), heads(k), heads(v)
    scores = jnp.einsum('bhqd,bhkd->bhqk', qh, kh, precision=hp) / (d_head ** 0.5)
    prob = jax.nn.softmax(scores, axis=-1)
    ctx = jnp.einsum('bhqk,bhkd->bhqd', prob, vh, precision=hp)
    ctx = ctx.transpose(0, 2, 1, 3).reshape(B, S, HD)
    att = jnp.einsum('bsf,fd->bsd', ctx, params["wo"], precision=hp) + params["bo"][0]

    def ln(y, g, b):
        mu = jnp.mean(y, -1, keepdims=True)
        var = jnp.mean((y - mu) ** 2, -1, keepdims=True)
        return (y - mu) * jax.lax.rsqrt(var + eps) * g[0] + b[0]

    h1 = ln(x + att, params["ln1_g"], params["ln1_b"])
    f = jax.nn.gelu(jnp.einsum('bsd,df->bsf', h1, params["w1"], precision=hp)
                    + params["b1"][0], approximate=False)
    f2 = jnp.einsum('bsf,fd->bsd', f, params["w2"], precision=hp) + params["b2"][0]
    out = ln(f2 + h1, params["ln2_g"], params["ln2_b"])
    return out, prob, ctx


# ----------------------------------------------------------------------------
if __name__ == "__main__":
    B, S = 2, 8                     # batch, sequence (window_size)
    D, n_head, d_head = 32, 4, 8    # embedding_dim, n_head, d_head
    eps = 1e-6                      # layer_norm_epsilon

    key = jax.random.PRNGKey(0)
    k_params, k_x = jax.random.split(key)
    params = init_encoder_layer_params(k_params, D, n_head, d_head)
    x = jax.random.normal(k_x, (B, S, D), jnp.float32)

    fwd = jax.jit(functools.partial(encoder_layer_forward,
                                    n_head=n_head, d_head=d_head, eps=eps))
    out, attn_prob, context = fwd(params, x)
    jax.block_until_ready((out, attn_prob, context))

    assert out.shape == (B, S, D)
    assert attn_prob.shape == (B, n_head, S, S)
    assert context.shape == (B, S, n_head * d_head)

    # Tolerance covers the in-kernel EUP approximate-reciprocal softmax and the
    # polynomial erf; it still catches any structural / weight-layout error.
    ref_out, ref_prob, ref_ctx = encoder_layer_reference(
        params, x, n_head=n_head, d_head=d_head, eps=eps)
    np.testing.assert_allclose(np.asarray(out), np.asarray(ref_out), rtol=1e-2, atol=1e-2)
    np.testing.assert_allclose(np.asarray(attn_prob), np.asarray(ref_prob), rtol=1e-2, atol=1e-2)
    np.testing.assert_allclose(np.asarray(context), np.asarray(ref_ctx), rtol=1e-2, atol=1e-2)

    print("KERNEL_OK")
</pallas_src>

<mosaic_0001>
module attributes {stable_mosaic.version = 11 : i64} {
  func.func @_encoder_layer_kernel(%arg0: memref<2x8x32xf32, #tpu.memory_space<vmem>>, %arg1: memref<32x96xf32, #tpu.memory_space<vmem>>, %arg2: memref<1x96xf32, #tpu.memory_space<vmem>>, %arg3: memref<32x32xf32, #tpu.memory_space<vmem>>, %arg4: memref<1x32xf32, #tpu.memory_space<vmem>>, %arg5: memref<1x32xf32, #tpu.memory_space<vmem>>, %arg6: memref<1x32xf32, #tpu.memory_space<vmem>>, %arg7: memref<32x128xf32, #tpu.memory_space<vmem>>, %arg8: memref<1x128xf32, #tpu.memory_space<vmem>>, %arg9: memref<128x32xf32, #tpu.memory_space<vmem>>, %arg10: memref<1x32xf32, #tpu.memory_space<vmem>>, %arg11: memref<1x32xf32, #tpu.memory_space<vmem>>, %arg12: memref<1x32xf32, #tpu.memory_space<vmem>>, %arg13: memref<2x8x32xf32, #tpu.memory_space<vmem>>, %arg14: memref<2x8x32xf32, #tpu.memory_space<vmem>>, %arg15: memref<2x8x32xf32, #tpu.memory_space<vmem>>) attributes {dimension_semantics = [], scalar_prefetch = 0 : i64, scratch_operands = 0 : i64, tpu.core_type = #tpu.core_type<tc>} {
    %c0 = arith.constant 0 : index
    %c0_0 = arith.constant 0 : index
    %c0_1 = arith.constant 0 : index
    %0 = vector.load %arg0[%c0, %c0_0, %c0_1] : memref<2x8x32xf32, #tpu.memory_space<vmem>>, vector<2x8x32xf32>
    %1 = vector.shape_cast %0 : vector<2x8x32xf32> to vector<16x32xf32>
    %c0_2 = arith.constant 0 : index
    %c0_3 = arith.constant 0 : index
    %2 = vector.load %arg1[%c0_2, %c0_3] : memref<32x96xf32, #tpu.memory_space<vmem>>, vector<32x96xf32>
    %cst = arith.constant dense<0.000000e+00> : vector<16x96xf32>
    %3 = tpu.matmul %1, %2, %cst {dimension_numbers = #tpu.dot_dimension_numbers<[1], [0], [0], [1], [0, 0, 1, 1], [], []>} : vector<16x32xf32>, vector<32x96xf32>, vector<16x96xf32> -> vector<16x96xf32>
    %c0_4 = arith.constant 0 : index
    %c0_5 = arith.constant 0 : index
    %4 = vector.load %arg2[%c0_4, %c0_5] : memref<1x96xf32, #tpu.memory_space<vmem>>, vector<1x96xf32>
    %5 = vector.broadcast %4 : vector<1x96xf32> to vector<16x96xf32>
    %6 = arith.addf %3, %5 : vector<16x96xf32>
    %7 = vector.extract_strided_slice %6 {offsets = [0, 0], sizes = [16, 32], strides = [1, 1]} : vector<16x96xf32> to vector<16x32xf32>
    %8 = vector.shape_cast %7 : vector<16x32xf32> to vector<2x8x32xf32>
    %9 = vector.extract_strided_slice %6 {offsets = [0, 32], sizes = [16, 32], strides = [1, 1]} : vector<16x96xf32> to vector<16x32xf32>
    %10 = vector.shape_cast %9 : vector<16x32xf32> to vector<2x8x32xf32>
    %11 = vector.extract_strided_slice %6 {offsets = [0, 64], sizes = [16, 32], strides = [1, 1]} : vector<16x96xf32> to vector<16x32xf32>
    %12 = vector.shape_cast %11 : vector<16x32xf32> to vector<2x8x32xf32>
    %13 = vector.extract_strided_slice %8 {offsets = [0, 0, 0], sizes = [2, 8, 8], strides = [1, 1, 1]} : vector<2x8x32xf32> to vector<2x8x8xf32>
    %14 = vector.extract_strided_slice %10 {offsets = [0, 0, 0], sizes = [2, 8, 8], strides = [1, 1, 1]} : vector<2x8x32xf32> to vector<2x8x8xf32>
    %15 = vector.extract_strided_slice %12 {offsets = [0, 0, 0], sizes = [2, 8, 8], strides = [1, 1, 1]} : vector<2x8x32xf32> to vector<2x8x8xf32>
    "tpu.trace_start"() <{level = 10 : i32, message = "bqd,bkd->bqk"}> : () -> ()
    %cst_6 = arith.constant dense<0.000000e+00> : vector<2x8x8xf32>
    %16 = tpu.matmul %13, %14, %cst_6 {dimension_numbers = #tpu.dot_dimension_numbers<[2], [2], [1], [1], [0, 0, 0, 1, 1, 1], [0], [0]>} : vector<2x8x8xf32>, vector<2x8x8xf32>, vector<2x8x8xf32> -> vector<2x8x8xf32>
    "tpu.trace_stop"() : () -> ()
    %cst_7 = arith.constant 0.353553385 : f32
    %17 = vector.broadcast %cst_7 : f32 to vector<2x8x8xf32>
    %18 = arith.mulf %16, %17 : vector<2x8x8xf32>
    %cst_8 = arith.constant dense<0xFF800000> : vector<2x8xf32>
    %19 = vector.multi_reduction <maximumf>, %18, %cst_8 [2] : vector<2x8x8xf32> to vector<2x8xf32>
    %20 = vector.shape_cast %19 : vector<2x8xf32> to vector<2x8x1xf32>
    %21 = vector.broadcast %20 : vector<2x8x1xf32> to vector<2x8x8xf32>
    %22 = arith.subf %18, %21 : vector<2x8x8xf32>
    %23 = math.exp %22 : vector<2x8x8xf32>
    %cst_9 = arith.constant dense<0.000000e+00> : vector<2x8xf32>
    %24 = vector.multi_reduction <add>, %23, %cst_9 [2] : vector<2x8x8xf32> to vector<2x8xf32>
    %25 = vector.shape_cast %24 : vector<2x8xf32> to vector<2x8x1xf32>
    %26 = tpu.reciprocal %25 {approx = true} : vector<2x8x1xf32> -> vector<2x8x1xf32>
    %27 = vector.broadcast %26 : vector<2x8x1xf32> to vector<2x8x8xf32>
    %28 = arith.mulf %23, %27 : vector<2x8x8xf32>
    "tpu.trace_start"() <{level = 10 : i32, message = "bqk,bkd->bqd"}> : () -> ()
    %cst_10 = arith.constant dense<0.000000e+00> : vector<2x8x8xf32>
    %29 = tpu.matmul %28, %15, %cst_10 {dimension_numbers = #tpu.dot_dimension_numbers<[2], [1], [1], [2], [0, 0, 0, 1, 1, 2], [0], [0]>} : vector<2x8x8xf32>, vector<2x8x8xf32>, vector<2x8x8xf32> -> vector<2x8x8xf32>
    "tpu.trace_stop"() : () -> ()
    %30 = vector.extract_strided_slice %8 {offsets = [0, 0, 8], sizes = [2, 8, 8], strides = [1, 1, 1]} : vector<2x8x32xf32> to vector<2x8x8xf32>
    %31 = vector.extract_strided_slice %10 {offsets = [0, 0, 8], sizes = [2, 8, 8], strides = [1, 1, 1]} : vector<2x8x32xf32> to vector<2x8x8xf32>
    %32 = vector.extract_strided_slice %12 {offsets = [0, 0, 8], sizes = [2, 8, 8], strides = [1, 1, 1]} : vector<2x8x32xf32> to vector<2x8x8xf32>
    "tpu.trace_start"() <{level = 10 : i32, message = "bqd,bkd->bqk"}> : () -> ()
    %cst_11 = arith.constant dense<0.000000e+00> : vector<2x8x8xf32>
    %33 = tpu.matmul %30, %31, %cst_11 {dimension_numbers = #tpu.dot_dimension_numbers<[2], [2], [1], [1], [0, 0, 0, 1, 1, 1], [0], [0]>} : vector<2x8x8xf32>, vector<2x8x8xf32>, vector<2x8x8xf32> -> vector<2x8x8xf32>
    "tpu.trace_stop"() : () -> ()
    %cst_12 = arith.constant 0.353553385 : f32
    %34 = vector.broadcast %cst_12 : f32 to vector<2x8x8xf32>
    %35 = arith.mulf %33, %34 : vector<2x8x8xf32>
    %cst_13 = arith.constant dense<0xFF800000> : vector<2x8xf32>
    %36 = vector.multi_reduction <maximumf>, %35, %cst_13 [2] : vector<2x8x8xf32> to vector<2x8xf32>
    %37 = vector.shape_cast %36 : vector<2x8xf32> to vector<2x8x1xf32>
    %38 = vector.broadcast %37 : vector<2x8x1xf32> to vector<2x8x8xf32>
    %39 = arith.subf %35, %38 : vector<2x8x8xf32>
    %40 = math.exp %39 : vector<2x8x8xf32>
    %cst_14 = arith.constant dense<0.000000e+00> : vector<2x8xf32>
    %41 = vector.multi_reduction <add>, %40, %cst_14 [2] : vector<2x8x8xf32> to vector<2x8xf32>
    %42 = vector.shape_cast %41 : vector<2x8xf32> to vector<2x8x1xf32>
    %43 = tpu.reciprocal %42 {approx = true} : vector<2x8x1xf32> -> vector<2x8x1xf32>
    %44 = vector.broadcast %43 : vector<2x8x1xf32> to vector<2x8x8xf32>
    %45 = arith.mulf %40, %44 : vector<2x8x8xf32>
    "tpu.trace_start"() <{level = 10 : i32, message = "bqk,bkd->bqd"}> : () -> ()
    %cst_15 = arith.constant dense<0.000000e+00> : vector<2x8x8xf32>
    %46 = tpu.matmul %45, %32, %cst_15 {dimension_numbers = #tpu.dot_dimension_numbers<[2], [1], [1], [2], [0, 0, 0, 1, 1, 2], [0], [0]>} : vector<2x8x8xf32>, vector<2x8x8xf32>, vector<2x8x8xf32> -> vector<2x8x8xf32>
    "tpu.trace_stop"() : () -> ()
    %47 = vector.extract_strided_slice %8 {offsets = [0, 0, 16], sizes = [2, 8, 8], strides = [1, 1, 1]} : vector<2x8x32xf32> to vector<2x8x8xf32>
    %48 = vector.extract_strided_slice %10 {offsets = [0, 0, 16], sizes = [2, 8, 8], strides = [1, 1, 1]} : vector<2x8x32xf32> to vector<2x8x8xf32>
    %49 = vector.extract_strided_slice %12 {offsets = [0, 0, 16], sizes = [2, 8, 8], strides = [1, 1, 1]} : vector<2x8x32xf32> to vector<2x8x8xf32>
    "tpu.trace_start"() <{level = 10 : i32, message = "bqd,bkd->bqk"}> : () -> ()
    %cst_16 = arith.constant dense<0.000000e+00> : vector<2x8x8xf32>
    %50 = tpu.matmul %47, %48, %cst_16 {dimension_numbers = #tpu.dot_dimension_numbers<[2], [2], [1], [1], [0, 0, 0, 1, 1, 1], [0], [0]>} : vector<2x8x8xf32>, vector<2x8x8xf32>, vector<2x8x8xf32> -> vector<2x8x8xf32>
    "tpu.trace_stop"() : () -> ()
    %cst_17 = arith.constant 0.353553385 : f32
    %51 = vector.broadcast %cst_17 : f32 to vector<2x8x8xf32>
    %52 = arith.mulf %50, %51 : vector<2x8x8xf32>
    %cst_18 = arith.constant dense<0xFF800000> : vector<2x8xf32>
    %53 = vector.multi_reduction <maximumf>, %52, %cst_18 [2] : vector<2x8x8xf32> to vector<2x8xf32>
    %54 = vector.shape_cast %53 : vector<2x8xf32> to vector<2x8x1xf32>
    %55 = vector.broadcast %54 : vector<2x8x1xf32> to vector<2x8x8xf32>
    %56 = arith.subf %52, %55 : vector<2x8x8xf32>
    %57 = math.exp %56 : vector<2x8x8xf32>
    %cst_19 = arith.constant dense<0.000000e+00> : vector<2x8xf32>
    %58 = vector.multi_reduction <add>, %57, %cst_19 [2] : vector<2x8x8xf32> to vector<2x8xf32>
    %59 = vector.shape_cast %58 : vector<2x8xf32> to vector<2x8x1xf32>
    %60 = tpu.reciprocal %59 {approx = true} : vector<2x8x1xf32> -> vector<2x8x1xf32>
    %61 = vector.broadcast %60 : vector<2x8x1xf32> to vector<2x8x8xf32>
    %62 = arith.mulf %57, %61 : vector<2x8x8xf32>
    "tpu.trace_start"() <{level = 10 : i32, message = "bqk,bkd->bqd"}> : () -> ()
    %cst_20 = arith.constant dense<0.000000e+00> : vector<2x8x8xf32>
    %63 = tpu.matmul %62, %49, %cst_20 {dimension_numbers = #tpu.dot_dimension_numbers<[2], [1], [1], [2], [0, 0, 0, 1, 1, 2], [0], [0]>} : vector<2x8x8xf32>, vector<2x8x8xf32>, vector<2x8x8xf32> -> vector<2x8x8xf32>
    "tpu.trace_stop"() : () -> ()
    %64 = vector.extract_strided_slice %8 {offsets = [0, 0, 24], sizes = [2, 8, 8], strides = [1, 1, 1]} : vector<2x8x32xf32> to vector<2x8x8xf32>
    %65 = vector.extract_strided_slice %10 {offsets = [0, 0, 24], sizes = [2, 8, 8], strides = [1, 1, 1]} : vector<2x8x32xf32> to vector<2x8x8xf32>
    %66 = vector.extract_strided_slice %12 {offsets = [0, 0, 24], sizes = [2, 8, 8], strides = [1, 1, 1]} : vector<2x8x32xf32> to vector<2x8x8xf32>
    "tpu.trace_start"() <{level = 10 : i32, message = "bqd,bkd->bqk"}> : () -> ()
    %cst_21 = arith.constant dense<0.000000e+00> : vector<2x8x8xf32>
    %67 = tpu.matmul %64, %65, %cst_21 {dimension_numbers = #tpu.dot_dimension_numbers<[2], [2], [1], [1], [0, 0, 0, 1, 1, 1], [0], [0]>} : vector<2x8x8xf32>, vector<2x8x8xf32>, vector<2x8x8xf32> -> vector<2x8x8xf32>
    "tpu.trace_stop"() : () -> ()
    %cst_22 = arith.constant 0.353553385 : f32
    %68 = vector.broadcast %cst_22 : f32 to vector<2x8x8xf32>
    %69 = arith.mulf %67, %68 : vector<2x8x8xf32>
    %cst_23 = arith.constant dense<0xFF800000> : vector<2x8xf32>
    %70 = vector.multi_reduction <maximumf>, %69, %cst_23 [2] : vector<2x8x8xf32> to vector<2x8xf32>
    %71 = vector.shape_cast %70 : vector<2x8xf32> to vector<2x8x1xf32>
    %72 = vector.broadcast %71 : vector<2x8x1xf32> to vector<2x8x8xf32>
    %73 = arith.subf %69, %72 : vector<2x8x8xf32>
    %74 = math.exp %73 : vector<2x8x8xf32>
    %cst_24 = arith.constant dense<0.000000e+00> : vector<2x8xf32>
    %75 = vector.multi_reduction <add>, %74, %cst_24 [2] : vector<2x8x8xf32> to vector<2x8xf32>
    %76 = vector.shape_cast %75 : vector<2x8xf32> to vector<2x8x1xf32>
    %77 = tpu.reciprocal %76 {approx = true} : vector<2x8x1xf32> -> vector<2x8x1xf32>
    %78 = vector.broadcast %77 : vector<2x8x1xf32> to vector<2x8x8xf32>
    %79 = arith.mulf %74, %78 : vector<2x8x8xf32>
    "tpu.trace_start"() <{level = 10 : i32, message = "bqk,bkd->bqd"}> : () -> ()
    %cst_25 = arith.constant dense<0.000000e+00> : vector<2x8x8xf32>
    %80 = tpu.matmul %79, %66, %cst_25 {dimension_numbers = #tpu.dot_dimension_numbers<[2], [1], [1], [2], [0, 0, 0, 1, 1, 2], [0], [0]>} : vector<2x8x8xf32>, vector<2x8x8xf32>, vector<2x8x8xf32> -> vector<2x8x8xf32>
    "tpu.trace_stop"() : () -> ()
    %81 = tpu.concatenate %28, %45, %62, %79 in 2 : vector<2x8x8xf32>, vector<2x8x8xf32>, vector<2x8x8xf32>, vector<2x8x8xf32> -> vector<2x8x32xf32>
    %c0_26 = arith.constant 0 : index
    %c0_27 = arith.constant 0 : index
    %c0_28 = arith.constant 0 : index
    %82 = vector.load %arg14[%c0_26, %c0_27, %c0_28] : memref<2x8x32xf32, #tpu.memory_space<vmem>>, vector<2x8x32xf32>
    tpu.vector_store %arg14[%c0_26, %c0_27, %c0_28], %81 {strides = array<i32>} : memref<2x8x32xf32, #tpu.memory_space<vmem>>, vector<2x8x32xf32>,
    %83 = tpu.concatenate %29, %46, %63, %80 in 2 : vector<2x8x8xf32>, vector<2x8x8xf32>, vector<2x8x8xf32>, vector<2x8x8xf32> -> vector<2x8x32xf32>
    %c0_29 = arith.constant 0 : index
    %c0_30 = arith.constant 0 : index
    %c0_31 = arith.constant 0 : index
    %84 = vector.load %arg15[%c0_29, %c0_30, %c0_31] : memref<2x8x32xf32, #tpu.memory_space<vmem>>, vector<2x8x32xf32>
    tpu.vector_store %arg15[%c0_29, %c0_30, %c0_31], %83 {strides = array<i32>} : memref<2x8x32xf32, #tpu.memory_space<vmem>>, vector<2x8x32xf32>,
    %85 = vector.shape_cast %83 : vector<2x8x32xf32> to vector<16x32xf32>
    %c0_32 = arith.constant 0 : index
    %c0_33 = arith.constant 0 : index
    %86 = vector.load %arg3[%c0_32, %c0_33] : memref<32x32xf32, #tpu.memory_space<vmem>>, vector<32x32xf32>
    %cst_34 = arith.constant dense<0.000000e+00> : vector<16x32xf32>
    %87 = tpu.matmul %85, %86, %cst_34 {dimension_numbers = #tpu.dot_dimension_numbers<[1], [0], [0], [1], [0, 0, 1, 1], [], []>} : vector<16x32xf32>, vector<32x32xf32>, vector<16x32xf32> -> vector<16x32xf32>
    %c0_35 = arith.constant 0 : index
    %c0_36 = arith.constant 0 : index
    %88 = vector.load %arg4[%c0_35, %c0_36] : memref<1x32xf32, #tpu.memory_space<vmem>>, vector<1x32xf32>
    %89 = vector.broadcast %88 : vector<1x32xf32> to vector<16x32xf32>
    %90 = arith.addf %87, %89 : vector<16x32xf32>
    %91 = arith.addf %1, %90 : vector<16x32xf32>
    %cst_37 = arith.constant dense<0.000000e+00> : vector<16xf32>
    %92 = vector.multi_reduction <add>, %91, %cst_37 [1] : vector<16x32xf32> to vector<16xf32>
    %93 = vector.shape_cast %92 : vector<16xf32> to vector<16x1xf32>
    %cst_38 = arith.constant 3.200000e+01 : f32
    %94 = vector.broadcast %cst_38 : f32 to vector<16x1xf32>
    %95 = arith.divf %93, %94 : vector<16x1xf32>
    %96 = vector.broadcast %95 : vector<16x1xf32> to vector<16x32xf32>
    %97 = arith.subf %91, %96 : vector<16x32xf32>
    %98 = arith.mulf %97, %97 : vector<16x32xf32>
    %cst_39 = arith.constant dense<0.000000e+00> : vector<16xf32>
    %99 = vector.multi_reduction <add>, %98, %cst_39 [1] : vector<16x32xf32> to vector<16xf32>
    %100 = vector.shape_cast %99 : vector<16xf32> to vector<16x1xf32>
    %cst_40 = arith.constant 3.200000e+01 : f32
    %101 = vector.broadcast %cst_40 : f32 to vector<16x1xf32>
    %102 = arith.divf %100, %101 : vector<16x1xf32>
    %cst_41 = arith.constant 9.99999997E-7 : f32
    %103 = vector.broadcast %cst_41 : f32 to vector<16x1xf32>
    %104 = arith.addf %102, %103 : vector<16x1xf32>
    %105 = math.rsqrt %104 : vector<16x1xf32>
    %106 = vector.broadcast %105 : vector<16x1xf32> to vector<16x32xf32>
    %107 = arith.mulf %97, %106 : vector<16x32xf32>
    %c0_42 = arith.constant 0 : index
    %c0_43 = arith.constant 0 : index
    %108 = vector.load %arg5[%c0_42, %c0_43] : memref<1x32xf32, #tpu.memory_space<vmem>>, vector<1x32xf32>
    %109 = vector.broadcast %108 : vector<1x32xf32> to vector<16x32xf32>
    %110 = arith.mulf %107, %109 : vector<16x32xf32>
    %c0_44 = arith.constant 0 : index
    %c0_45 = arith.constant 0 : index
    %111 = vector.load %arg6[%c0_44, %c0_45] : memref<1x32xf32, #tpu.memory_space<vmem>>, vector<1x32xf32>
    %112 = vector.broadcast %111 : vector<1x32xf32> to vector<16x32xf32>
    %113 = arith.addf %110, %112 : vector<16x32xf32>
    %c0_46 = arith.constant 0 : index
    %c0_47 = arith.constant 0 : index
    %114 = vector.load %arg7[%c0_46, %c0_47] : memref<32x128xf32, #tpu.memory_space<vmem>>, vector<32x128xf32>
    %cst_48 = arith.constant dense<0.000000e+00> : vector<16x128xf32>
    %115 = tpu.matmul %113, %114, %cst_48 {dimension_numbers = #tpu.dot_dimension_numbers<[1], [0], [0], [1], [0, 0, 1, 1], [], []>} : vector<16x32xf32>, vector<32x128xf32>, vector<16x128xf32> -> vector<16x128xf32>
    %c0_49 = arith.constant 0 : index
    %c0_50 = arith.constant 0 : index
    %116 = vector.load %arg8[%c0_49, %c0_50] : memref<1x128xf32, #tpu.memory_space<vmem>>, vector<1x128xf32>
    %117 = vector.broadcast %116 : vector<1x128xf32> to vector<16x128xf32>
    %118 = arith.addf %115, %117 : vector<16x128xf32>
    %cst_51 = arith.constant 5.000000e-01 : f32
    %119 = vector.broadcast %cst_51 : f32 to vector<16x128xf32>
    %120 = arith.mulf %119, %118 : vector<16x128xf32>
    %cst_52 = arith.constant 0.707106769 : f32
    %121 = vector.broadcast %cst_52 : f32 to vector<16x128xf32>
    %122 = arith.mulf %118, %121 : vector<16x128xf32>
    %123 = math.absf %122 : vector<16x128xf32>
    %cst_53 = arith.constant 0.327591091 : f32
    %124 = vector.broadcast %cst_53 : f32 to vector<16x128xf32>
    %125 = arith.mulf %124, %123 : vector<16x128xf32>
    %cst_54 = arith.constant 1.000000e+00 : f32
    %126 = vector.broadcast %cst_54 : f32 to vector<16x128xf32>
    %127 = arith.addf %126, %125 : vector<16x128xf32>
    %cst_55 = arith.constant 1.000000e+00 : f32
    %128 = vector.broadcast %cst_55 : f32 to vector<16x128xf32>
    %129 = arith.divf %128, %127 : vector<16x128xf32>
    %cst_56 = arith.constant 1.06140542 : f32
    %130 = vector.broadcast %cst_56 : f32 to vector<16x128xf32>
    %131 = arith.mulf %130, %129 : vector<16x128xf32>
    %cst_57 = arith.constant -1.45315206 : f32
    %132 = vector.broadcast %cst_57 : f32 to vector<16x128xf32>
    %133 = arith.addf %131, %132 : vector<16x128xf32>
    %134 = arith.mulf %133, %129 : vector<16x128xf32>
    %cst_58 = arith.constant 1.42141378 : f32
    %135 = vector.broadcast %cst_58 : f32 to vector<16x128xf32>
    %136 = arith.addf %134, %135 : vector<16x128xf32>
    %137 = arith.mulf %136, %129 : vector<16x128xf32>
    %cst_59 = arith.constant -0.284496725 : f32
    %138 = vector.broadcast %cst_59 : f32 to vector<16x128xf32>
    %139 = arith.addf %137, %138 : vector<16x128xf32>
    %140 = arith.mulf %139, %129 : vector<16x128xf32>
    %cst_60 = arith.constant 0.254829586 : f32
    %141 = vector.broadcast %cst_60 : f32 to vector<16x128xf32>
    %142 = arith.addf %140, %141 : vector<16x128xf32>
    %143 = arith.mulf %142, %129 : vector<16x128xf32>
    %cst_61 = arith.constant 0.000000e+00 : f32
    %144 = vector.broadcast %cst_61 : f32 to vector<16x128xf32>
    %145 = arith.subf %144, %123 : vector<16x128xf32>
    %146 = arith.mulf %145, %123 : vector<16x128xf32>
    %147 = math.exp %146 : vector<16x128xf32>
    %148 = arith.mulf %143, %147 : vector<16x128xf32>
    %cst_62 = arith.constant 1.000000e+00 : f32
    %149 = vector.broadcast %cst_62 : f32 to vector<16x128xf32>
    %150 = arith.subf %149, %148 : vector<16x128xf32>
    %cst_63 = arith.constant 0.000000e+00 : f32
    %151 = vector.broadcast %cst_63 : f32 to vector<16x128xf32>
    %152 = arith.cmpf oge, %122, %151 : vector<16x128xf32>
    %cst_64 = arith.constant 0.000000e+00 : f32
    %153 = vector.broadcast %cst_64 : f32 to vector<16x128xf32>
    %154 = arith.subf %153, %150 : vector<16x128xf32>
    %155 = arith.select %152, %150, %154 : vector<16x128xi1>, vector<16x128xf32>
    %cst_65 = arith.constant 1.000000e+00 : f32
    %156 = vector.broadcast %cst_65 : f32 to vector<16x128xf32>
    %157 = arith.addf %156, %155 : vector<16x128xf32>
    %158 = arith.mulf %120, %157 : vector<16x128xf32>
    %c0_66 = arith.constant 0 : index
    %c0_67 = arith.constant 0 : index
    %159 = vector.load %arg9[%c0_66, %c0_67] : memref<128x32xf32, #tpu.memory_space<vmem>>, vector<128x32xf32>
    %cst_68 = arith.constant dense<0.000000e+00> : vector<16x32xf32>
    %160 = tpu.matmul %158, %159, %cst_68 {dimension_numbers = #tpu.dot_dimension_numbers<[1], [0], [0], [1], [0, 0, 1, 1], [], []>} : vector<16x128xf32>, vector<128x32xf32>, vector<16x32xf32> -> vector<16x32xf32>
    %c0_69 = arith.constant 0 : index
    %c0_70 = arith.constant 0 : index
    %161 = vector.load %arg10[%c0_69, %c0_70] : memref<1x32xf32, #tpu.memory_space<vmem>>, vector<1x32xf32>
    %162 = vector.broadcast %161 : vector<1x32xf32> to vector<16x32xf32>
    %163 = arith.addf %160, %162 : vector<16x32xf32>
    %164 = arith.addf %163, %113 : vector<16x32xf32>
    %cst_71 = arith.constant dense<0.000000e+00> : vector<16xf32>
    %165 = vector.multi_reduction <add>, %164, %cst_71 [1] : vector<16x32xf32> to vector<16xf32>
    %166 = vector.shape_cast %165 : vector<16xf32> to vector<16x1xf32>
    %cst_72 = arith.constant 3.200000e+01 : f32
    %167 = vector.broadcast %cst_72 : f32 to vector<16x1xf32>
    %168 = arith.divf %166, %167 : vector<16x1xf32>
    %169 = vector.broadcast %168 : vector<16x1xf32> to vector<16x32xf32>
    %170 = arith.subf %164, %169 : vector<16x32xf32>
    %171 = arith.mulf %170, %170 : vector<16x32xf32>
    %cst_73 = arith.constant dense<0.000000e+00> : vector<16xf32>
    %172 = vector.multi_reduction <add>, %171, %cst_73 [1] : vector<16x32xf32> to vector<16xf32>
    %173 = vector.shape_cast %172 : vector<16xf32> to vector<16x1xf32>
    %cst_74 = arith.constant 3.200000e+01 : f32
    %174 = vector.broadcast %cst_74 : f32 to vector<16x1xf32>
    %175 = arith.divf %173, %174 : vector<16x1xf32>
    %cst_75 = arith.constant 9.99999997E-7 : f32
    %176 = vector.broadcast %cst_75 : f32 to vector<16x1xf32>
    %177 = arith.addf %175, %176 : vector<16x1xf32>
    %178 = math.rsqrt %177 : vector<16x1xf32>
    %179 = vector.broadcast %178 : vector<16x1xf32> to vector<16x32xf32>
    %180 = arith.mulf %170, %179 : vector<16x32xf32>
    %c0_76 = arith.constant 0 : index
    %c0_77 = arith.constant 0 : index
    %181 = vector.load %arg11[%c0_76, %c0_77] : memref<1x32xf32, #tpu.memory_space<vmem>>, vector<1x32xf32>
    %182 = vector.broadcast %181 : vector<1x32xf32> to vector<16x32xf32>
    %183 = arith.mulf %180, %182 : vector<16x32xf32>
    %c0_78 = arith.constant 0 : index
    %c0_79 = arith.constant 0 : index
    %184 = vector.load %arg12[%c0_78, %c0_79] : memref<1x32xf32, #tpu.memory_space<vmem>>, vector<1x32xf32>
    %185 = vector.broadcast %184 : vector<1x32xf32> to vector<16x32xf32>
    %186 = arith.addf %183, %185 : vector<16x32xf32>
    %187 = vector.shape_cast %186 : vector<16x32xf32> to vector<2x8x32xf32>
    %c0_80 = arith.constant 0 : index
    %c0_81 = arith.constant 0 : index
    %c0_82 = arith.constant 0 : index
    %188 = vector.load %arg13[%c0_80, %c0_81, %c0_82] : memref<2x8x32xf32, #tpu.memory_space<vmem>>, vector<2x8x32xf32>
    tpu.vector_store %arg13[%c0_80, %c0_81, %c0_82], %187 {strides = array<i32>} : memref<2x8x32xf32, #tpu.memory_space<vmem>>, vector<2x8x32xf32>,
    return
  }
}

</mosaic_0001>

<llo_original>
// kernel: encoder_layer_forward.1
$region0: #{encoder_layer_forward.1}
  #allocation0 [shape = 'u32[]', space=smem, size = 0x4, offset = 0x4, fixed_abs, tag = 'smem constant byte address 0x4 - core index']
  #allocation1 [shape = 'u32[144,128]{1,0:T(1,128)}', space=vmem, size = 0x12000, scoped, tag = 'internal scratch']
  %s0 = inlined_call_operand.vmem [shape: f32[2,8,32], index: 0, kind: input, shape index: {}]
  %s1 = inlined_call_operand.vmem [shape: f32[32,96], index: 1, kind: input, shape index: {}]
  %s2 = inlined_call_operand.vmem [shape: f32[1,96], index: 2, kind: input, shape index: {}]
  %s3 = inlined_call_operand.vmem [shape: f32[32,32], index: 3, kind: input, shape index: {}]
  %s4 = inlined_call_operand.vmem [shape: f32[1,32], index: 4, kind: input, shape index: {}]
  %s5 = inlined_call_operand.vmem [shape: f32[1,32], index: 5, kind: input, shape index: {}]
  %s6 = inlined_call_operand.vmem [shape: f32[1,32], index: 6, kind: input, shape index: {}]
  %s7 = inlined_call_operand.vmem [shape: f32[32,128], index: 7, kind: input, shape index: {}]
  %s8 = inlined_call_operand.vmem [shape: f32[1,128], index: 8, kind: input, shape index: {}]
  %s9 = inlined_call_operand.vmem [shape: f32[128,32], index: 9, kind: input, shape index: {}]
  %s10 = inlined_call_operand.vmem [shape: f32[1,32], index: 10, kind: input, shape index: {}]
  %s11 = inlined_call_operand.vmem [shape: f32[1,32], index: 11, kind: input, shape index: {}]
  %s12 = inlined_call_operand.vmem [shape: f32[1,32], index: 12, kind: input, shape index: {}]
  %s13 = inlined_call_operand.hbm [shape: f32[2,8,32], index: 13, kind: output, shape index: {0}]
  %s14 = inlined_call_operand.vmem [shape: f32[2,8,32], index: 14, kind: output, shape index: {1}]
  %s15 = inlined_call_operand.hbm [shape: f32[2,8,32], index: 15, kind: output, shape index: {2}]
  %16 = xla_tuple %s13, %s14, %s15
  %s17 = sld [smem:[#allocation0]]
  $region78: #{encoder_layer_forward.1} parent=0
    _
  %s19 = ssub.s32 1, %s17
  %s20 = scalar_select 0, %s19, %s17
  $region1: #{encoder_layer_forward.1} parent=0
    #allocation2 [shape = 'u8[8192]{0}', space=vmem, size = 0x2000, scoped, tag = 'output window, operand 0, single buffered']
    #allocation3 [shape = 's32[1]{0}', space=sflag, size = 0x4, scoped, tag = 'scoped memory for encoder_layer_forward.1']
    #allocation4 [shape = 'u8[8192]{0}', space=vmem, size = 0x2000, scoped, tag = 'output window, operand 2, single buffered']
    #allocation5 [shape = 's32[1]{0}', space=sflag, size = 0x4, scoped, tag = 'scoped memory for encoder_layer_forward.1']
    %21 = vsyncpa [#allocation3], 0
    %22 = vsyncpa [#allocation5], 0
    // Predicated region
    $region2: #{encoder_layer_forward.1} parent=1 // pred_check
      _
    $region3: #{encoder_layer_forward.1} parent=1 // pred_check_branch
      %24 = sbr.rel (0) target = $region5
    $region4: #{encoder_layer_forward.1} parent=1 // pred_region
      _
    $region5: #{encoder_layer_forward.1} parent=1 // pred_fallthru
      _
    // Predicated region
    $region6: #{encoder_layer_forward.1} parent=1 // pred_check
      _
    $region7: #{encoder_layer_forward.1} parent=1 // pred_check_branch
      %26 = sbr.rel (0) target = $region9
    $region8: #{encoder_layer_forward.1} parent=1 // pred_region
      _
    $region9: #{encoder_layer_forward.1} parent=1 // pred_fallthru
      _
    // Predicated region
    $region10: #{encoder_layer_forward.1} parent=1 // pred_check
      _
    $region11: #{encoder_layer_forward.1} parent=1 // pred_check_branch
      %28 = sbr.rel (0) target = $region13
    $region12: #{encoder_layer_forward.1} parent=1 // pred_region
      _
    $region13: #{encoder_layer_forward.1} parent=1 // pred_fallthru
      _
    // Predicated region
    $region14: #{encoder_layer_forward.1} parent=1 // pred_check
      _
    $region15: #{encoder_layer_forward.1} parent=1 // pred_check_branch
      %30 = sbr.rel (0) target = $region17
    $region16: #{encoder_layer_forward.1} parent=1 // pred_region
      _
    $region17: #{encoder_layer_forward.1} parent=1 // pred_fallthru
      _
    // Predicated region
    $region18: #{encoder_layer_forward.1} parent=1 // pred_check
      _
    $region19: #{encoder_layer_forward.1} parent=1 // pred_check_branch
      %32 = sbr.rel (0) target = $region21
    $region20: #{encoder_layer_forward.1} parent=1 // pred_region
      _
    $region21: #{encoder_layer_forward.1} parent=1 // pred_fallthru
      _
    // Predicated region
    $region22: #{encoder_layer_forward.1} parent=1 // pred_check
      _
    $region23: #{encoder_layer_forward.1} parent=1 // pred_check_branch
      %34 = sbr.rel (0) target = $region25
    $region24: #{encoder_layer_forward.1} parent=1 // pred_region
      _
    $region25: #{encoder_layer_forward.1} parent=1 // pred_fallthru
      _
    // Predicated region
    $region26: #{encoder_layer_forward.1} parent=1 // pred_check
      _
    $region27: #{encoder_layer_forward.1} parent=1 // pred_check_branch
      %36 = sbr.rel (0) target = $region29
    $region28: #{encoder_layer_forward.1} parent=1 // pred_region
      _
    $region29: #{encoder_layer_forward.1} parent=1 // pred_fallthru
      _
    // Predicated region
    $region30: #{encoder_layer_forward.1} parent=1 // pred_check
      _
    $region31: #{encoder_layer_forward.1} parent=1 // pred_check_branch
      %38 = sbr.rel (0) target = $region33
    $region32: #{encoder_layer_forward.1} parent=1 // pred_region
      _
    $region33: #{encoder_layer_forward.1} parent=1 // pred_fallthru
      _
    // Predicated region
    $region34: #{encoder_layer_forward.1} parent=1 // pred_check
      _
    $region35: #{encoder_layer_forward.1} parent=1 // pred_check_branch
      %40 = sbr.rel (0) target = $region37
    $region36: #{encoder_layer_forward.1} parent=1 // pred_region
      _
    $region37: #{encoder_layer_forward.1} parent=1 // pred_fallthru
      _
    // Predicated region
    $region38: #{encoder_layer_forward.1} parent=1 // pred_check
      _
    $region39: #{encoder_layer_forward.1} parent=1 // pred_check_branch
      %42 = sbr.rel (0) target = $region41
    $region40: #{encoder_layer_forward.1} parent=1 // pred_region
      _
    $region41: #{encoder_layer_forward.1} parent=1 // pred_fallthru
      _
    // Predicated region
    $region42: #{encoder_layer_forward.1} parent=1 // pred_check
      _
    $region43: #{encoder_layer_forward.1} parent=1 // pred_check_branch
      %44 = sbr.rel (0) target = $region45
    $region44: #{encoder_layer_forward.1} parent=1 // pred_region
      _
    $region45: #{encoder_layer_forward.1} parent=1 // pred_fallthru
      _
    // Predicated region
    $region46: #{encoder_layer_forward.1} parent=1 // pred_check
      _
    $region47: #{encoder_layer_forward.1} parent=1 // pred_check_branch
      %46 = sbr.rel (0) target = $region49
    $region48: #{encoder_layer_forward.1} parent=1 // pred_region
      _
    $region49: #{encoder_layer_forward.1} parent=1 // pred_fallthru
      _
    // Predicated region
    $region50: #{encoder_layer_forward.1} parent=1 // pred_check
      _
    $region51: #{encoder_layer_forward.1} parent=1 // pred_check_branch
      %48 = sbr.rel (0) target = $region53
    $region52: #{encoder_layer_forward.1} parent=1 // pred_region
      _
    $region53: #{encoder_layer_forward.1} parent=1 // pred_fallthru
      _
    %v49 = vld [vmem:[%s0] sm:$0xff]
    %v50 = vld [vmem:[%s0 + $0x8] sm:$0xff]
    %v51 = vld [vmem:[%s1] sm:$0xff]
    %v52 = vld [vmem:[%s1 + $0x8] sm:$0xff]
    %v53 = vld [vmem:[%s1 + $0x10] sm:$0xff]
    %v54 = vld [vmem:[%s1 + $0x18] sm:$0xff]
    %v55 = vld [vmem:[%s2] sm:$0x1]
    %v57 = vlaneseq
    %v58 = vshrl.u32 %v57, 7
    %v59 = vsub.s32 0, %v58
    %v60 = vrot.slane %v55, %v59
    %vm62 = vcmask 261120
    %v64 = vsel %vm62, %v49, 0
    %v67 = vsel %vm62, %v50, 0
    %69 = vmatprep.subr.mxu0 0.0
    %70 = vmatpush1.msra.mxu0 0.0
    %71 = vmatprep.subr.mxu0 0.0
    %72 = vmatpush1.msra.mxu0 0.0
    %73 = vmatprep.subr.mxu0 0.0
    %74 = vmatpush1.msra.mxu0 0.0
    %75 = vmatprep.subr.mxu0 0.0
    %76 = vmatpush1.msra.mxu0 0.0
    %77 = vmatprep.subr.mxu0 0.0
    %78 = vmatpush1.msra.mxu0 0.0
    %79 = vmatprep.subr.mxu0 0.0
    %80 = vmatpush1.msra.mxu0 0.0
    %81 = vmatprep.subr.mxu0 0.0
    %82 = vmatpush1.msra.mxu0 0.0
    %83 = vmatprep.subr.mxu0 0.0
    %84 = vmatpush1.msra.mxu0 0.0
    %85 = vmatprep.subr.mxu0 0.0
    %86 = vmatpush1.msra.mxu0 0.0
    %87 = vmatprep.subr.mxu0 0.0
    %88 = vmatpush1.msra.mxu0 0.0
    %89 = vmatprep.subr.mxu0 0.0
    %90 = vmatpush1.msra.mxu0 0.0
    %91 = vmatprep.subr.mxu0 0.0
    %92 = vmatpush1.msra.mxu0 0.0
    %93 = vmatprep.subr.mxu0 0.0
    %94 = vmatpush1.msra.mxu0 %v54
    %95 = vmatprep.subr.mxu0 0.0
    %96 = vmatpush1.msra.mxu0 %v53
    %97 = vmatprep.subr.mxu0 0.0
    %98 = vmatpush1.msra.mxu0 %v52
    %99 = vmatprep.subr.mxu0 0.0
    %100 = vmatpush1.msra.mxu0 %v51
    %101 = vmatprep.subr.mxu0 0.0
    %102 = vmatpush2.msra.mxu0 0.0
    %103 = vmatprep.subr.mxu0 0.0
    %104 = vmatpush2.msra.mxu0 0.0
    %105 = vmatprep.subr.mxu0 0.0
    %106 = vmatpush2.msra.mxu0 0.0
    %107 = vmatprep.subr.mxu0 0.0
    %108 = vmatpush2.msra.mxu0 0.0
    %109 = vmatprep.subr.mxu0 0.0
    %110 = vmatpush2.msra.mxu0 0.0
    %111 = vmatprep.subr.mxu0 0.0
    %112 = vmatpush2.msra.mxu0 0.0
    %113 = vmatprep.subr.mxu0 0.0
    %114 = vmatpush2.msra.mxu0 0.0
    %115 = vmatprep.subr.mxu0 0.0
    %116 = vmatpush2.msra.mxu0 0.0
    %117 = vmatprep.subr.mxu0 0.0
    %118 = vmatpush2.msra.mxu0 0.0
    %119 = vmatprep.subr.mxu0 0.0
    %120 = vmatpush2.msra.mxu0 0.0
    %121 = vmatprep.subr.mxu0 0.0
    %122 = vmatpush2.msra.mxu0 0.0
    %123 = vmatprep.subr.mxu0 0.0
    %124 = vmatpush2.msra.mxu0 0.0
    %125 = vmatprep.subr.mxu0 0.0
    %126 = vmatpush2.msra.mxu0 0.0
    %127 = vmatprep.subr.mxu0 0.0
    %128 = vmatpush2.msra.mxu0 0.0
    %129 = vmatprep.subr.mxu0 0.0
    %130 = vmatpush2.msra.mxu0 0.0
    %131 = vmatprep.subr.mxu0 0.0
    %132 = vmatpush2.msra.mxu0 0.0
    %133 = vmatprep.mubr.f32.mxu0 0.0
    %134 = vmatmul.mubr.f32.gmra.mxu0 %v64
    %v135 = vpop.f32.mrf.mxu0
    %v136 = vadd.f32 %v60, %v135
    %v137 = vpop.f32.mrf.mxu0
    %138 = vmatprep.mubr.f32.mxu0 0.0
    %139 = vmatmul.mubr.f32.gmra.mxu0 %v67
    %v140 = vpop.f32.mrf.mxu0
    %v141 = vadd.f32 %v60, %v140
    %v142 = vpop.f32.mrf.mxu0
    %143 = vdwg.mxu0
    %145 = vrot.lane.b32.xlu0 %v136, 96
    %v146 = vpop.permute.xlu0 %145
    %vm147 = vcmask 64512
    %v148 = vsel %vm147, %v136, 0
    %v150 = vsel %vm147, %v146, 0
    %152 = vmatprep.subr.mxu0 0.0
    %153 = vmatpush1.xpose.msra.mxu0 0.0
    %154 = vmatprep.subr.mxu0 0.0
    %155 = vmatpush1.xpose.msra.mxu0 0.0
    %156 = vmatprep.subr.mxu0 0.0
    %157 = vmatpush1.xpose.msra.mxu0 0.0
    %158 = vmatprep.subr.mxu0 0.0
    %159 = vmatpush1.xpose.msra.mxu0 0.0
    %160 = vmatprep.subr.mxu0 0.0
    %161 = vmatpush1.xpose.msra.mxu0 0.0
    %162 = vmatprep.subr.mxu0 0.0
    %163 = vmatpush1.xpose.msra.mxu0 0.0
    %164 = vmatprep.subr.mxu0 0.0
    %165 = vmatpush1.xpose.msra.mxu0 0.0
    %166 = vmatprep.subr.mxu0 0.0
    %167 = vmatpush1.xpose.msra.mxu0 0.0
    %168 = vmatprep.subr.mxu0 0.0
    %169 = vmatpush1.xpose.msra.mxu0 0.0
    %170 = vmatprep.subr.mxu0 0.0
    %171 = vmatpush1.xpose.msra.mxu0 0.0
    %172 = vmatprep.subr.mxu0 0.0
    %173 = vmatpush1.xpose.msra.mxu0 0.0
    %174 = vmatprep.subr.mxu0 0.0
    %175 = vmatpush1.xpose.msra.mxu0 0.0
    %176 = vmatprep.subr.mxu0 0.0
    %177 = vmatpush1.xpose.msra.mxu0 0.0
    %178 = vmatprep.subr.mxu0 0.0
    %179 = vmatpush1.xpose.msra.mxu0 0.0
    %180 = vmatprep.subr.mxu0 0.0
    %181 = vmatpush1.xpose.msra.mxu0 0.0
    %182 = vmatprep.subr.mxu0 0.0
    %183 = vmatpush1.xpose.msra.mxu0 %v150
    %184 = vmatprep.subr.mxu0 0.0
    %185 = vmatpush2.xpose.msra.mxu0 0.0
    %186 = vmatprep.subr.mxu0 0.0
    %187 = vmatpush2.xpose.msra.mxu0 0.0
    %188 = vmatprep.subr.mxu0 0.0
    %189 = vmatpush2.xpose.msra.mxu0 0.0
    %190 = vmatprep.subr.mxu0 0.0
    %191 = vmatpush2.xpose.msra.mxu0 0.0
    %192 = vmatprep.subr.mxu0 0.0
    %193 = vmatpush2.xpose.msra.mxu0 0.0
    %194 = vmatprep.subr.mxu0 0.0
    %195 = vmatpush2.xpose.msra.mxu0 0.0
    %196 = vmatprep.subr.mxu0 0.0
    %197 = vmatpush2.xpose.msra.mxu0 0.0
    %198 = vmatprep.subr.mxu0 0.0
    %199 = vmatpush2.xpose.msra.mxu0 0.0
    %200 = vmatprep.subr.mxu0 0.0
    %201 = vmatpush2.xpose.msra.mxu0 0.0
    %202 = vmatprep.subr.mxu0 0.0
    %203 = vmatpush2.xpose.msra.mxu0 0.0
    %204 = vmatprep.subr.mxu0 0.0
    %205 = vmatpush2.xpose.msra.mxu0 0.0
    %206 = vmatprep.subr.mxu0 0.0
    %207 = vmatpush2.xpose.msra.mxu0 0.0
    %208 = vmatprep.subr.mxu0 0.0
    %209 = vmatpush2.xpose.msra.mxu0 0.0
    %210 = vmatprep.subr.mxu0 0.0
    %211 = vmatpush2.xpose.msra.mxu0 0.0
    %212 = vmatprep.subr.mxu0 0.0
    %213 = vmatpush2.xpose.msra.mxu0 0.0
    %214 = vmatprep.subr.mxu0 0.0
    %215 = vmatpush2.xpose.msra.mxu0 0.0
    %216 = vmatprep.mubr.f32.mxu0 0.0
    %217 = vmatmul.mubr.f32.gmra.mxu0 %v148
    %v218 = vpop.f32.mrf.mxu0
    %v219 = vadd.f32 0.0, %v218
    %v220 = vpop.f32.mrf.mxu0
    %221 = vdwg.mxu0
    %223 = vrot.lane.b32.xlu0 %v141, 96
    %v224 = vpop.permute.xlu0 %223
    %v225 = vsel %vm147, %v141, 0
    %v227 = vsel %vm147, %v224, 0
    %229 = vmatprep.subr.mxu0 0.0
    %230 = vmatpush1.xpose.msra.mxu0 0.0
    %231 = vmatprep.subr.mxu0 0.0
    %232 = vmatpush1.xpose.msra.mxu0 0.0
    %233 = vmatprep.subr.mxu0 0.0
    %234 = vmatpush1.xpose.msra.mxu0 0.0
    %235 = vmatprep.subr.mxu0 0.0
    %236 = vmatpush1.xpose.msra.mxu0 0.0
    %237 = vmatprep.subr.mxu0 0.0
    %238 = vmatpush1.xpose.msra.mxu0 0.0
    %239 = vmatprep.subr.mxu0 0.0
    %240 = vmatpush1.xpose.msra.mxu0 0.0
    %241 = vmatprep.subr.mxu0 0.0
    %242 = vmatpush1.xpose.msra.mxu0 0.0
    %243 = vmatprep.subr.mxu0 0.0
    %244 = vmatpush1.xpose.msra.mxu0 0.0
    %245 = vmatprep.subr.mxu0 0.0
    %246 = vmatpush1.xpose.msra.mxu0 0.0
    %247 = vmatprep.subr.mxu0 0.0
    %248 = vmatpush1.xpose.msra.mxu0 0.0
    %249 = vmatprep.subr.mxu0 0.0
    %250 = vmatpush1.xpose.msra.mxu0 0.0
    %251 = vmatprep.subr.mxu0 0.0
    %252 = vmatpush1.xpose.msra.mxu0 0.0
    %253 = vmatprep.subr.mxu0 0.0
    %254 = vmatpush1.xpose.msra.mxu0 0.0
    %255 = vmatprep.subr.mxu0 0.0
    %256 = vmatpush1.xpose.msra.mxu0 0.0
    %257 = vmatprep.subr.mxu0 0.0
    %258 = vmatpush1.xpose.msra.mxu0 0.0
    %259 = vmatprep.subr.mxu0 0.0
    %260 = vmatpush1.xpose.msra.mxu0 %v227
    %261 = vmatprep.subr.mxu0 0.0
    %262 = vmatpush2.xpose.msra.mxu0 0.0
    %263 = vmatprep.subr.mxu0 0.0
    %264 = vmatpush2.xpose.msra.mxu0 0.0
    %265 = vmatprep.subr.mxu0 0.0
    %266 = vmatpush2.xpose.msra.mxu0 0.0
    %267 = vmatprep.subr.mxu0 0.0
    %268 = vmatpush2.xpose.msra.mxu0 0.0
    %269 = vmatprep.subr.mxu0 0.0
    %270 = vmatpush2.xpose.msra.mxu0 0.0
    %271 = vmatprep.subr.mxu0 0.0
    %272 = vmatpush2.xpose.msra.mxu0 0.0
    %273 = vmatprep.subr.mxu0 0.0
    %274 = vmatpush2.xpose.msra.mxu0 0.0
    %275 = vmatprep.subr.mxu0 0.0
    %276 = vmatpush2.xpose.msra.mxu0 0.0
    %277 = vmatprep.subr.mxu0 0.0
    %278 = vmatpush2.xpose.msra.mxu0 0.0
    %279 = vmatprep.subr.mxu0 0.0
    %280 = vmatpush2.xpose.msra.mxu0 0.0
    %281 = vmatprep.subr.mxu0 0.0
    %282 = vmatpush2.xpose.msra.mxu0 0.0
    %283 = vmatprep.subr.mxu0 0.0
    %284 = vmatpush2.xpose.msra.mxu0 0.0
    %285 = vmatprep.subr.mxu0 0.0
    %286 = vmatpush2.xpose.msra.mxu0 0.0
    %287 = vmatprep.subr.mxu0 0.0
    %288 = vmatpush2.xpose.msra.mxu0 0.0
    %289 = vmatprep.subr.mxu0 0.0
    %290 = vmatpush2.xpose.msra.mxu0 0.0
    %291 = vmatprep.subr.mxu0 0.0
    %292 = vmatpush2.xpose.msra.mxu0 0.0
    %293 = vmatprep.mubr.f32.mxu0 0.0
    %294 = vmatmul.mubr.f32.gmra.mxu0 %v225
    %v295 = vpop.f32.mrf.mxu0
    %v296 = vadd.f32 0.0, %v295
    %v297 = vpop.f32.mrf.mxu0
    %298 = vdwg.mxu0
    %v299 = vmul.f32 %v219, 0.35355338
    %v300 = vmul.f32 %v296, 0.35355338
    %v301 = vsel %vm147, %v299, -inf
    %302 = vmax.xlane.f32.xlu0 %v301
    %v303 = vpop.xlane.xlu0 %302
    %v304 = vsel %vm147, %v300, -inf
    %305 = vmax.xlane.f32.xlu0 %v304
    %v306 = vpop.xlane.xlu0 %305
    %v307 = vsub.f32 %v299, %v303
    %v308 = vsub.f32 %v300, %v306
    %v309 = vmul.f32 %v307, 1.442695
    %v310 = vpow.pop %v309
    %v311 = vmul.f32 %v308, 1.442695
    %v312 = vpow.pop %v311
    %v313 = vsel %vm147, %v310, 0.0
    %314 = vadd.xlane.f32.xlu0 %v313
    %v315 = vpop.xlane.xlu0 %314
    %v316 = vsel %vm147, %v312, 0.0
    %317 = vadd.xlane.f32.xlu0 %v316
    %v318 = vpop.xlane.xlu0 %317
    %v319 = vrcp.pop %v315
    %v320 = vrcp.pop %v318
    %v321 = vmul.f32 %v310, %v319
    %v322 = vmul.f32 %v312, %v320
    %323 = vrot.lane.b32.xlu0 %v136, 64
    %v324 = vpop.permute.xlu0 %323
    %v327 = vsel %vm147, %v321, 0
    %329 = vmatprep.subr.mxu0 0.0
    %330 = vmatpush1.msra.mxu0 0.0
    %331 = vmatprep.subr.mxu0 0.0
    %332 = vmatpush1.msra.mxu0 0.0
    %333 = vmatprep.subr.mxu0 0.0
    %334 = vmatpush1.msra.mxu0 0.0
    %335 = vmatprep.subr.mxu0 0.0
    %336 = vmatpush1.msra.mxu0 0.0
    %337 = vmatprep.subr.mxu0 0.0
    %338 = vmatpush1.msra.mxu0 0.0
    %339 = vmatprep.subr.mxu0 0.0
    %340 = vmatpush1.msra.mxu0 0.0
    %341 = vmatprep.subr.mxu0 0.0
    %342 = vmatpush1.msra.mxu0 0.0
    %343 = vmatprep.subr.mxu0 0.0
    %344 = vmatpush1.msra.mxu0 0.0
    %345 = vmatprep.subr.mxu0 0.0
    %346 = vmatpush1.msra.mxu0 0.0
    %347 = vmatprep.subr.mxu0 0.0
    %348 = vmatpush1.msra.mxu0 0.0
    %349 = vmatprep.subr.mxu0 0.0
    %350 = vmatpush1.msra.mxu0 0.0
    %351 = vmatprep.subr.mxu0 0.0
    %352 = vmatpush1.msra.mxu0 0.0
    %353 = vmatprep.subr.mxu0 0.0
    %354 = vmatpush1.msra.mxu0 0.0
    %355 = vmatprep.subr.mxu0 0.0
    %356 = vmatpush1.msra.mxu0 0.0
    %357 = vmatprep.subr.mxu0 0.0
    %358 = vmatpush1.msra.mxu0 0.0
    %359 = vmatprep.subr.mxu0 0.0
    %360 = vmatpush1.msra.mxu0 %v324
    %361 = vmatprep.subr.mxu0 0.0
    %362 = vmatpush2.msra.mxu0 0.0
    %363 = vmatprep.subr.mxu0 0.0
    %364 = vmatpush2.msra.mxu0 0.0
    %365 = vmatprep.subr.mxu0 0.0
    %366 = vmatpush2.msra.mxu0 0.0
    %367 = vmatprep.subr.mxu0 0.0
    %368 = vmatpush2.msra.mxu0 0.0
    %369 = vmatprep.subr.mxu0 0.0
    %370 = vmatpush2.msra.mxu0 0.0
    %371 = vmatprep.subr.mxu0 0.0
    %372 = vmatpush2.msra.mxu0 0.0
    %373 = vmatprep.subr.mxu0 0.0
    %374 = vmatpush2.msra.mxu0 0.0
    %375 = vmatprep.subr.mxu0 0.0
    %376 = vmatpush2.msra.mxu0 0.0
    %377 = vmatprep.subr.mxu0 0.0
    %378 = vmatpush2.msra.mxu0 0.0
    %379 = vmatprep.subr.mxu0 0.0
    %380 = vmatpush2.msra.mxu0 0.0
    %381 = vmatprep.subr.mxu0 0.0
    %382 = vmatpush2.msra.mxu0 0.0
    %383 = vmatprep.subr.mxu0 0.0
    %384 = vmatpush2.msra.mxu0 0.0
    %385 = vmatprep.subr.mxu0 0.0
    %386 = vmatpush2.msra.mxu0 0.0
    %387 = vmatprep.subr.mxu0 0.0
    %388 = vmatpush2.msra.mxu0 0.0
    %389 = vmatprep.subr.mxu0 0.0
    %390 = vmatpush2.msra.mxu0 0.0
    %391 = vmatprep.subr.mxu0 0.0
    %392 = vmatpush2.msra.mxu0 0.0
    %393 = vmatprep.mubr.f32.mxu0 0.0
    %394 = vmatmul.mubr.f32.gmra.mxu0 %v327
    %v395 = vpop.f32.mrf.mxu0
    %v396 = vadd.f32 0.0, %v395
    %v397 = vpop.f32.mrf.mxu0
    %398 = vdwg.mxu0
    %399 = vrot.lane.b32.xlu0 %v141, 64
    %v400 = vpop.permute.xlu0 %399
    %v403 = vsel %vm147, %v322, 0
    %405 = vmatprep.subr.mxu0 0.0
    %406 = vmatpush1.msra.mxu0 0.0
    %407 = vmatprep.subr.mxu0 0.0
    %408 = vmatpush1.msra.mxu0 0.0
    %409 = vmatprep.subr.mxu0 0.0
    %410 = vmatpush1.msra.mxu0 0.0
    %411 = vmatprep.subr.mxu0 0.0
    %412 = vmatpush1.msra.mxu0 0.0
    %413 = vmatprep.subr.mxu0 0.0
    %414 = vmatpush1.msra.mxu0 0.0
    %415 = vmatprep.subr.mxu0 0.0
    %416 = vmatpush1.msra.mxu0 0.0
    %417 = vmatprep.subr.mxu0 0.0
    %418 = vmatpush1.msra.mxu0 0.0
    %419 = vmatprep.subr.mxu0 0.0
    %420 = vmatpush1.msra.mxu0 0.0
    %421 = vmatprep.subr.mxu0 0.0
    %422 = vmatpush1.msra.mxu0 0.0
    %423 = vmatprep.subr.mxu0 0.0
    %424 = vmatpush1.msra.mxu0 0.0
    %425 = vmatprep.subr.mxu0 0.0
    %426 = vmatpush1.msra.mxu0 0.0
    %427 = vmatprep.subr.mxu0 0.0
    %428 = vmatpush1.msra.mxu0 0.0
    %429 = vmatprep.subr.mxu0 0.0
    %430 = vmatpush1.msra.mxu0 0.0
    %431 = vmatprep.subr.mxu0 0.0
    %432 = vmatpush1.msra.mxu0 0.0
    %433 = vmatprep.subr.mxu0 0.0
    %434 = vmatpush1.msra.mxu0 0.0
    %435 = vmatprep.subr.mxu0 0.0
    %436 = vmatpush1.msra.mxu0 %v400
    %437 = vmatprep.subr.mxu0 0.0
    %438 = vmatpush2.msra.mxu0 0.0
    %439 = vmatprep.subr.mxu0 0.0
    %440 = vmatpush2.msra.mxu0 0.0
    %441 = vmatprep.subr.mxu0 0.0
    %442 = vmatpush2.msra.mxu0 0.0
    %443 = vmatprep.subr.mxu0 0.0
    %444 = vmatpush2.msra.mxu0 0.0
    %445 = vmatprep.subr.mxu0 0.0
    %446 = vmatpush2.msra.mxu0 0.0
    %447 = vmatprep.subr.mxu0 0.0
    %448 = vmatpush2.msra.mxu0 0.0
    %449 = vmatprep.subr.mxu0 0.0
    %450 = vmatpush2.msra.mxu0 0.0
    %451 = vmatprep.subr.mxu0 0.0
    %452 = vmatpush2.msra.mxu0 0.0
    %453 = vmatprep.subr.mxu0 0.0
    %454 = vmatpush2.msra.mxu0 0.0
    %455 = vmatprep.subr.mxu0 0.0
    %456 = vmatpush2.msra.mxu0 0.0
    %457 = vmatprep.subr.mxu0 0.0
    %458 = vmatpush2.msra.mxu0 0.0
    %459 = vmatprep.subr.mxu0 0.0
    %460 = vmatpush2.msra.mxu0 0.0
    %461 = vmatprep.subr.mxu0 0.0
    %462 = vmatpush2.msra.mxu0 0.0
    %463 = vmatprep.subr.mxu0 0.0
    %464 = vmatpush2.msra.mxu0 0.0
    %465 = vmatprep.subr.mxu0 0.0
    %466 = vmatpush2.msra.mxu0 0.0
    %467 = vmatprep.subr.mxu0 0.0
    %468 = vmatpush2.msra.mxu0 0.0
    %469 = vmatprep.mubr.f32.mxu0 0.0
    %470 = vmatmul.mubr.f32.gmra.mxu0 %v403
    %v471 = vpop.f32.mrf.mxu0
    %v472 = vadd.f32 0.0, %v471
    %v473 = vpop.f32.mrf.mxu0
    %474 = vdwg.mxu0
    %475 = vrot.lane.b32.xlu0 %v136, 120
    %v476 = vpop.permute.xlu0 %475
    %477 = vrot.lane.b32.xlu0 %v136, 88
    %v478 = vpop.permute.xlu0 %477
    %v479 = vsel %vm147, %v476, 0
    %v481 = vsel %vm147, %v478, 0
    %483 = vmatprep.subr.mxu0 0.0
    %484 = vmatpush1.xpose.msra.mxu0 0.0
    %485 = vmatprep.subr.mxu0 0.0
    %486 = vmatpush1.xpose.msra.mxu0 0.0
    %487 = vmatprep.subr.mxu0 0.0
    %488 = vmatpush1.xpose.msra.mxu0 0.0
    %489 = vmatprep.subr.mxu0 0.0
    %490 = vmatpush1.xpose.msra.mxu0 0.0
    %491 = vmatprep.subr.mxu0 0.0
    %492 = vmatpush1.xpose.msra.mxu0 0.0
    %493 = vmatprep.subr.mxu0 0.0
    %494 = vmatpush1.xpose.msra.mxu0 0.0
    %495 = vmatprep.subr.mxu0 0.0
    %496 = vmatpush1.xpose.msra.mxu0 0.0
    %497 = vmatprep.subr.mxu0 0.0
    %498 = vmatpush1.xpose.msra.mxu0 0.0
    %499 = vmatprep.subr.mxu0 0.0
    %500 = vmatpush1.xpose.msra.mxu0 0.0
    %501 = vmatprep.subr.mxu0 0.0
    %502 = vmatpush1.xpose.msra.mxu0 0.0
    %503 = vmatprep.subr.mxu0 0.0
    %504 = vmatpush1.xpose.msra.mxu0 0.0
    %505 = vmatprep.subr.mxu0 0.0
    %506 = vmatpush1.xpose.msra.mxu0 0.0
    %507 = vmatprep.subr.mxu0 0.0
    %508 = vmatpush1.xpose.msra.mxu0 0.0
    %509 = vmatprep.subr.mxu0 0.0
    %510 = vmatpush1.xpose.msra.mxu0 0.0
    %511 = vmatprep.subr.mxu0 0.0
    %512 = vmatpush1.xpose.msra.mxu0 0.0
    %513 = vmatprep.subr.mxu0 0.0
    %514 = vmatpush1.xpose.msra.mxu0 %v481
    %515 = vmatprep.subr.mxu0 0.0
    %516 = vmatpush2.xpose.msra.mxu0 0.0
    %517 = vmatprep.subr.mxu0 0.0
    %518 = vmatpush2.xpose.msra.mxu0 0.0
    %519 = vmatprep.subr.mxu0 0.0
    %520 = vmatpush2.xpose.msra.mxu0 0.0
    %521 = vmatprep.subr.mxu0 0.0
    %522 = vmatpush2.xpose.msra.mxu0 0.0
    %523 = vmatprep.subr.mxu0 0.0
    %524 = vmatpush2.xpose.msra.mxu0 0.0
    %525 = vmatprep.subr.mxu0 0.0
    %526 = vmatpush2.xpose.msra.mxu0 0.0
    %527 = vmatprep.subr.mxu0 0.0
    %528 = vmatpush2.xpose.msra.mxu0 0.0
    %529 = vmatprep.subr.mxu0 0.0
    %530 = vmatpush2.xpose.msra.mxu0 0.0
    %531 = vmatprep.subr.mxu0 0.0
    %532 = vmatpush2.xpose.msra.mxu0 0.0
    %533 = vmatprep.subr.mxu0 0.0
    %534 = vmatpush2.xpose.msra.mxu0 0.0
    %535 = vmatprep.subr.mxu0 0.0
    %536 = vmatpush2.xpose.msra.mxu0 0.0
    %537 = vmatprep.subr.mxu0 0.0
    %538 = vmatpush2.xpose.msra.mxu0 0.0
    %539 = vmatprep.subr.mxu0 0.0
    %540 = vmatpush2.xpose.msra.mxu0 0.0
    %541 = vmatprep.subr.mxu0 0.0
    %542 = vmatpush2.xpose.msra.mxu0 0.0
    %543 = vmatprep.subr.mxu0 0.0
    %544 = vmatpush2.xpose.msra.mxu0 0.0
    %545 = vmatprep.subr.mxu0 0.0
    %546 = vmatpush2.xpose.msra.mxu0 0.0
    %547 = vmatprep.mubr.f32.mxu0 0.0
    %548 = vmatmul.mubr.f32.gmra.mxu0 %v479
    %v549 = vpop.f32.mrf.mxu0
    %v550 = vadd.f32 0.0, %v549
    %v551 = vpop.f32.mrf.mxu0
    %552 = vdwg.mxu0
    %553 = vrot.lane.b32.xlu0 %v141, 120
    %v554 = vpop.permute.xlu0 %553
    %555 = vrot.lane.b32.xlu0 %v141, 88
    %v556 = vpop.permute.xlu0 %555
    %v557 = vsel %vm147, %v554, 0
    %v559 = vsel %vm147, %v556, 0
    %561 = vmatprep.subr.mxu0 0.0
    %562 = vmatpush1.xpose.msra.mxu0 0.0
    %563 = vmatprep.subr.mxu0 0.0
    %564 = vmatpush1.xpose.msra.mxu0 0.0
    %565 = vmatprep.subr.mxu0 0.0
    %566 = vmatpush1.xpose.msra.mxu0 0.0
    %567 = vmatprep.subr.mxu0 0.0
    %568 = vmatpush1.xpose.msra.mxu0 0.0
    %569 = vmatprep.subr.mxu0 0.0
    %570 = vmatpush1.xpose.msra.mxu0 0.0
    %571 = vmatprep.subr.mxu0 0.0
    %572 = vmatpush1.xpose.msra.mxu0 0.0
    %573 = vmatprep.subr.mxu0 0.0
    %574 = vmatpush1.xpose.msra.mxu0 0.0
    %575 = vmatprep.subr.mxu0 0.0
    %576 = vmatpush1.xpose.msra.mxu0 0.0
    %577 = vmatprep.subr.mxu0 0.0
    %578 = vmatpush1.xpose.msra.mxu0 0.0
    %579 = vmatprep.subr.mxu0 0.0
    %580 = vmatpush1.xpose.msra.mxu0 0.0
    %581 = vmatprep.subr.mxu0 0.0
    %582 = vmatpush1.xpose.msra.mxu0 0.0
    %583 = vmatprep.subr.mxu0 0.0
    %584 = vmatpush1.xpose.msra.mxu0 0.0
    %585 = vmatprep.subr.mxu0 0.0
    %586 = vmatpush1.xpose.msra.mxu0 0.0
    %587 = vmatprep.subr.mxu0 0.0
    %588 = vmatpush1.xpose.msra.mxu0 0.0
    %589 = vmatprep.subr.mxu0 0.0
    %590 = vmatpush1.xpose.msra.mxu0 0.0
    %591 = vmatprep.subr.mxu0 0.0
    %592 = vmatpush1.xpose.msra.mxu0 %v559
    %593 = vmatprep.subr.mxu0 0.0
    %594 = vmatpush2.xpose.msra.mxu0 0.0
    %595 = vmatprep.subr.mxu0 0.0
    %596 = vmatpush2.xpose.msra.mxu0 0.0
    %597 = vmatprep.subr.mxu0 0.0
    %598 = vmatpush2.xpose.msra.mxu0 0.0
    %599 = vmatprep.subr.mxu0 0.0
    %600 = vmatpush2.xpose.msra.mxu0 0.0
    %601 = vmatprep.subr.mxu0 0.0
    %602 = vmatpush2.xpose.msra.mxu0 0.0
    %603 = vmatprep.subr.mxu0 0.0
    %604 = vmatpush2.xpose.msra.mxu0 0.0
    %605 = vmatprep.subr.mxu0 0.0
    %606 = vmatpush2.xpose.msra.mxu0 0.0
    %607 = vmatprep.subr.mxu0 0.0
    %608 = vmatpush2.xpose.msra.mxu0 0.0
    %609 = vmatprep.subr.mxu0 0.0
    %610 = vmatpush2.xpose.msra.mxu0 0.0
    %611 = vmatprep.subr.mxu0 0.0
    %612 = vmatpush2.xpose.msra.mxu0 0.0
    %613 = vmatprep.subr.mxu0 0.0
    %614 = vmatpush2.xpose.msra.mxu0 0.0
    %615 = vmatprep.subr.mxu0 0.0
    %616 = vmatpush2.xpose.msra.mxu0 0.0
    %617 = vmatprep.subr.mxu0 0.0
    %618 = vmatpush2.xpose.msra.mxu0 0.0
    %619 = vmatprep.subr.mxu0 0.0
    %620 = vmatpush2.xpose.msra.mxu0 0.0
    %621 = vmatprep.subr.mxu0 0.0
    %622 = vmatpush2.xpose.msra.mxu0 0.0
    %623 = vmatprep.subr.mxu0 0.0
    %624 = vmatpush2.xpose.msra.mxu0 0.0
    %625 = vmatprep.mubr.f32.mxu0 0.0
    %626 = vmatmul.mubr.f32.gmra.mxu0 %v557
    %v627 = vpop.f32.mrf.mxu0
    %v628 = vadd.f32 0.0, %v627
    %v629 = vpop.f32.mrf.mxu0
    %630 = vdwg.mxu0
    %v631 = vmul.f32 %v550, 0.35355338
    %v632 = vmul.f32 %v628, 0.35355338
    %v633 = vsel %vm147, %v631, -inf
    %634 = vmax.xlane.f32.xlu0 %v633
    %v635 = vpop.xlane.xlu0 %634
    %v636 = vsel %vm147, %v632, -inf
    %637 = vmax.xlane.f32.xlu0 %v636
    %v638 = vpop.xlane.xlu0 %637
    %v639 = vsub.f32 %v631, %v635
    %v640 = vsub.f32 %v632, %v638
    %v641 = vmul.f32 %v639, 1.442695
    %v642 = vpow.pop %v641
    %v643 = vmul.f32 %v640, 1.442695
    %v644 = vpow.pop %v643
    %v645 = vsel %vm147, %v642, 0.0
    %646 = vadd.xlane.f32.xlu0 %v645
    %v647 = vpop.xlane.xlu0 %646
    %v648 = vsel %vm147, %v644, 0.0
    %649 = vadd.xlane.f32.xlu0 %v648
    %v650 = vpop.xlane.xlu0 %649
    %v651 = vrcp.pop %v647
    %v652 = vrcp.pop %v650
    %v653 = vmul.f32 %v642, %v651
    %v654 = vmul.f32 %v644, %v652
    %655 = vrot.lane.b32.xlu0 %v136, 56
    %v656 = vpop.permute.xlu0 %655
    %v659 = vsel %vm147, %v653, 0
    %661 = vmatprep.subr.mxu0 0.0
    %662 = vmatpush1.msra.mxu0 0.0
    %663 = vmatprep.subr.mxu0 0.0
    %664 = vmatpush1.msra.mxu0 0.0
    %665 = vmatprep.subr.mxu0 0.0
    %666 = vmatpush1.msra.mxu0 0.0
    %667 = vmatprep.subr.mxu0 0.0
    %668 = vmatpush1.msra.mxu0 0.0
    %669 = vmatprep.subr.mxu0 0.0
    %670 = vmatpush1.msra.mxu0 0.0
    %671 = vmatprep.subr.mxu0 0.0
    %672 = vmatpush1.msra.mxu0 0.0
    %673 = vmatprep.subr.mxu0 0.0
    %674 = vmatpush1.msra.mxu0 0.0
    %675 = vmatprep.subr.mxu0 0.0
    %676 = vmatpush1.msra.mxu0 0.0
    %677 = vmatprep.subr.mxu0 0.0
    %678 = vmatpush1.msra.mxu0 0.0
    %679 = vmatprep.subr.mxu0 0.0
    %680 = vmatpush1.msra.mxu0 0.0
    %681 = vmatprep.subr.mxu0 0.0
    %682 = vmatpush1.msra.mxu0 0.0
    %683 = vmatprep.subr.mxu0 0.0
    %684 = vmatpush1.msra.mxu0 0.0
    %685 = vmatprep.subr.mxu0 0.0
    %686 = vmatpush1.msra.mxu0 0.0
    %687 = vmatprep.subr.mxu0 0.0
    %688 = vmatpush1.msra.mxu0 0.0
    %689 = vmatprep.subr.mxu0 0.0
    %690 = vmatpush1.msra.mxu0 0.0
    %691 = vmatprep.subr.mxu0 0.0
    %692 = vmatpush1.msra.mxu0 %v656
    %693 = vmatprep.subr.mxu0 0.0
    %694 = vmatpush2.msra.mxu0 0.0
    %695 = vmatprep.subr.mxu0 0.0
    %696 = vmatpush2.msra.mxu0 0.0
    %697 = vmatprep.subr.mxu0 0.0
    %698 = vmatpush2.msra.mxu0 0.0
    %699 = vmatprep.subr.mxu0 0.0
    %700 = vmatpush2.msra.mxu0 0.0
    %701 = vmatprep.subr.mxu0 0.0
    %702 = vmatpush2.msra.mxu0 0.0
    %703 = vmatprep.subr.mxu0 0.0
    %704 = vmatpush2.msra.mxu0 0.0
    %705 = vmatprep.subr.mxu0 0.0
    %706 = vmatpush2.msra.mxu0 0.0
    %707 = vmatprep.subr.mxu0 0.0
    %708 = vmatpush2.msra.mxu0 0.0
    %709 = vmatprep.subr.mxu0 0.0
    %710 = vmatpush2.msra.mxu0 0.0
    %711 = vmatprep.subr.mxu0 0.0
    %712 = vmatpush2.msra.mxu0 0.0
    %713 = vmatprep.subr.mxu0 0.0
    %714 = vmatpush2.msra.mxu0 0.0
    %715 = vmatprep.subr.mxu0 0.0
    %716 = vmatpush2.msra.mxu0 0.0
    %717 = vmatprep.subr.mxu0 0.0
    %718 = vmatpush2.msra.mxu0 0.0
    %719 = vmatprep.subr.mxu0 0.0
    %720 = vmatpush2.msra.mxu0 0.0
    %721 = vmatprep.subr.mxu0 0.0
    %722 = vmatpush2.msra.mxu0 0.0
    %723 = vmatprep.subr.mxu0 0.0
    %724 = vmatpush2.msra.mxu0 0.0
    %725 = vmatprep.mubr.f32.mxu0 0.0
    %726 = vmatmul.mubr.f32.gmra.mxu0 %v659
    %v727 = vpop.f32.mrf.mxu0
    %v728 = vadd.f32 0.0, %v727
    %v729 = vpop.f32.mrf.mxu0
    %730 = vdwg.mxu0
    %731 = vrot.lane.b32.xlu0 %v141, 56
    %v732 = vpop.permute.xlu0 %731
    %v735 = vsel %vm147, %v654, 0
    %737 = vmatprep.subr.mxu0 0.0
    %738 = vmatpush1.msra.mxu0 0.0
    %739 = vmatprep.subr.mxu0 0.0
    %740 = vmatpush1.msra.mxu0 0.0
    %741 = vmatprep.subr.mxu0 0.0
    %742 = vmatpush1.msra.mxu0 0.0
    %743 = vmatprep.subr.mxu0 0.0
    %744 = vmatpush1.msra.mxu0 0.0
    %745 = vmatprep.subr.mxu0 0.0
    %746 = vmatpush1.msra.mxu0 0.0
    %747 = vmatprep.subr.mxu0 0.0
    %748 = vmatpush1.msra.mxu0 0.0
    %749 = vmatprep.subr.mxu0 0.0
    %750 = vmatpush1.msra.mxu0 0.0
    %751 = vmatprep.subr.mxu0 0.0
    %752 = vmatpush1.msra.mxu0 0.0
    %753 = vmatprep.subr.mxu0 0.0
    %754 = vmatpush1.msra.mxu0 0.0
    %755 = vmatprep.subr.mxu0 0.0
    %756 = vmatpush1.msra.mxu0 0.0
    %757 = vmatprep.subr.mxu0 0.0
    %758 = vmatpush1.msra.mxu0 0.0
    %759 = vmatprep.subr.mxu0 0.0
    %760 = vmatpush1.msra.mxu0 0.0
    %761 = vmatprep.subr.mxu0 0.0
    %762 = vmatpush1.msra.mxu0 0.0
    %763 = vmatprep.subr.mxu0 0.0
    %764 = vmatpush1.msra.mxu0 0.0
    %765 = vmatprep.subr.mxu0 0.0
    %766 = vmatpush1.msra.mxu0 0.0
    %767 = vmatprep.subr.mxu0 0.0
    %768 = vmatpush1.msra.mxu0 %v732
    %769 = vmatprep.subr.mxu0 0.0
    %770 = vmatpush2.msra.mxu0 0.0
    %771 = vmatprep.subr.mxu0 0.0
    %772 = vmatpush2.msra.mxu0 0.0
    %773 = vmatprep.subr.mxu0 0.0
    %774 = vmatpush2.msra.mxu0 0.0
    %775 = vmatprep.subr.mxu0 0.0
    %776 = vmatpush2.msra.mxu0 0.0
    %777 = vmatprep.subr.mxu0 0.0
    %778 = vmatpush2.msra.mxu0 0.0
    %779 = vmatprep.subr.mxu0 0.0
    %780 = vmatpush2.msra.mxu0 0.0
    %781 = vmatprep.subr.mxu0 0.0
    %782 = vmatpush2.msra.mxu0 0.0
    %783 = vmatprep.subr.mxu0 0.0
    %784 = vmatpush2.msra.mxu0 0.0
    %785 = vmatprep.subr.mxu0 0.0
    %786 = vmatpush2.msra.mxu0 0.0
    %787 = vmatprep.subr.mxu0 0.0
    %788 = vmatpush2.msra.mxu0 0.0
    %789 = vmatprep.subr.mxu0 0.0
    %790 = vmatpush2.msra.mxu0 0.0
    %791 = vmatprep.subr.mxu0 0.0
    %792 = vmatpush2.msra.mxu0 0.0
    %793 = vmatprep.subr.mxu0 0.0
    %794 = vmatpush2.msra.mxu0 0.0
    %795 = vmatprep.subr.mxu0 0.0
    %796 = vmatpush2.msra.mxu0 0.0
    %797 = vmatprep.subr.mxu0 0.0
    %798 = vmatpush2.msra.mxu0 0.0
    %799 = vmatprep.subr.mxu0 0.0
    %800 = vmatpush2.msra.mxu0 0.0
    %801 = vmatprep.mubr.f32.mxu0 0.0
    %802 = vmatmul.mubr.f32.gmra.mxu0 %v735
    %v803 = vpop.f32.mrf.mxu0
    %v804 = vadd.f32 0.0, %v803
    %v805 = vpop.f32.mrf.mxu0
    %806 = vdwg.mxu0
    %807 = vrot.lane.b32.xlu0 %v136, 112
    %v808 = vpop.permute.xlu0 %807
    %809 = vrot.lane.b32.xlu0 %v136, 80
    %v810 = vpop.permute.xlu0 %809
    %v811 = vsel %vm147, %v808, 0
    %v813 = vsel %vm147, %v810, 0
    %815 = vmatprep.subr.mxu0 0.0
    %816 = vmatpush1.xpose.msra.mxu0 0.0
    %817 = vmatprep.subr.mxu0 0.0
    %818 = vmatpush1.xpose.msra.mxu0 0.0
    %819 = vmatprep.subr.mxu0 0.0
    %820 = vmatpush1.xpose.msra.mxu0 0.0
    %821 = vmatprep.subr.mxu0 0.0
    %822 = vmatpush1.xpose.msra.mxu0 0.0
    %823 = vmatprep.subr.mxu0 0.0
    %824 = vmatpush1.xpose.msra.mxu0 0.0
    %825 = vmatprep.subr.mxu0 0.0
    %826 = vmatpush1.xpose.msra.mxu0 0.0
    %827 = vmatprep.subr.mxu0 0.0
    %828 = vmatpush1.xpose.msra.mxu0 0.0
    %829 = vmatprep.subr.mxu0 0.0
    %830 = vmatpush1.xpose.msra.mxu0 0.0
    %831 = vmatprep.subr.mxu0 0.0
    %832 = vmatpush1.xpose.msra.mxu0 0.0
    %833 = vmatprep.subr.mxu0 0.0
    %834 = vmatpush1.xpose.msra.mxu0 0.0
    %835 = vmatprep.subr.mxu0 0.0
    %836 = vmatpush1.xpose.msra.mxu0 0.0
    %837 = vmatprep.subr.mxu0 0.0
    %838 = vmatpush1.xpose.msra.mxu0 0.0
    %839 = vmatprep.subr.mxu0 0.0
    %840 = vmatpush1.xpose.msra.mxu0 0.0
    %841 = vmatprep.subr.mxu0 0.0
    %842 = vmatpush1.xpose.msra.mxu0 0.0
    %843 = vmatprep.subr.mxu0 0.0
    %844 = vmatpush1.xpose.msra.mxu0 0.0
    %845 = vmatprep.subr.mxu0 0.0
    %846 = vmatpush1.xpose.msra.mxu0 %v813
    %847 = vmatprep.subr.mxu0 0.0
    %848 = vmatpush2.xpose.msra.mxu0 0.0
    %849 = vmatprep.subr.mxu0 0.0
    %850 = vmatpush2.xpose.msra.mxu0 0.0
    %851 = vmatprep.subr.mxu0 0.0
    %852 = vmatpush2.xpose.msra.mxu0 0.0
    %853 = vmatprep.subr.mxu0 0.0
    %854 = vmatpush2.xpose.msra.mxu0 0.0
    %855 = vmatprep.subr.mxu0 0.0
    %856 = vmatpush2.xpose.msra.mxu0 0.0
    %857 = vmatprep.subr.mxu0 0.0
    %858 = vmatpush2.xpose.msra.mxu0 0.0
    %859 = vmatprep.subr.mxu0 0.0
    %860 = vmatpush2.xpose.msra.mxu0 0.0
    %861 = vmatprep.subr.mxu0 0.0
    %862 = vmatpush2.xpose.msra.mxu0 0.0
    %863 = vmatprep.subr.mxu0 0.0
    %864 = vmatpush2.xpose.msra.mxu0 0.0
    %865 = vmatprep.subr.mxu0 0.0
    %866 = vmatpush2.xpose.msra.mxu0 0.0
    %867 = vmatprep.subr.mxu0 0.0
    %868 = vmatpush2.xpose.msra.mxu0 0.0
    %869 = vmatprep.subr.mxu0 0.0
    %870 = vmatpush2.xpose.msra.mxu0 0.0
    %871 = vmatprep.subr.mxu0 0.0
    %872 = vmatpush2.xpose.msra.mxu0 0.0
    %873 = vmatprep.subr.mxu0 0.0
    %874 = vmatpush2.xpose.msra.mxu0 0.0
    %875 = vmatprep.subr.mxu0 0.0
    %876 = vmatpush2.xpose.msra.mxu0 0.0
    %877 = vmatprep.subr.mxu0 0.0
    %878 = vmatpush2.xpose.msra.mxu0 0.0
    %879 = vmatprep.mubr.f32.mxu0 0.0
    %880 = vmatmul.mubr.f32.gmra.mxu0 %v811
    %v881 = vpop.f32.mrf.mxu0
    %v882 = vadd.f32 0.0, %v881
    %v883 = vpop.f32.mrf.mxu0
    %884 = vdwg.mxu0
    %885 = vrot.lane.b32.xlu0 %v141, 112
    %v886 = vpop.permute.xlu0 %885
    %887 = vrot.lane.b32.xlu0 %v141, 80
    %v888 = vpop.permute.xlu0 %887
    %v889 = vsel %vm147, %v886, 0
    %v891 = vsel %vm147, %v888, 0
    %893 = vmatprep.subr.mxu0 0.0
    %894 = vmatpush1.xpose.msra.mxu0 0.0
    %895 = vmatprep.subr.mxu0 0.0
    %896 = vmatpush1.xpose.msra.mxu0 0.0
    %897 = vmatprep.subr.mxu0 0.0
    %898 = vmatpush1.xpose.msra.mxu0 0.0
    %899 = vmatprep.subr.mxu0 0.0
    %900 = vmatpush1.xpose.msra.mxu0 0.0
    %901 = vmatprep.subr.mxu0 0.0
    %902 = vmatpush1.xpose.msra.mxu0 0.0
    %903 = vmatprep.subr.mxu0 0.0
    %904 = vmatpush1.xpose.msra.mxu0 0.0
    %905 = vmatprep.subr.mxu0 0.0
    %906 = vmatpush1.xpose.msra.mxu0 0.0
    %907 = vmatprep.subr.mxu0 0.0
    %908 = vmatpush1.xpose.msra.mxu0 0.0
    %909 = vmatprep.subr.mxu0 0.0
    %910 = vmatpush1.xpose.msra.mxu0 0.0
    %911 = vmatprep.subr.mxu0 0.0
    %912 = vmatpush1.xpose.msra.mxu0 0.0
    %913 = vmatprep.subr.mxu0 0.0
    %914 = vmatpush1.xpose.msra.mxu0 0.0
    %915 = vmatprep.subr.mxu0 0.0
    %916 = vmatpush1.xpose.msra.mxu0 0.0
    %917 = vmatprep.subr.mxu0 0.0
    %918 = vmatpush1.xpose.msra.mxu0 0.0
    %919 = vmatprep.subr.mxu0 0.0
    %920 = vmatpush1.xpose.msra.mxu0 0.0
    %921 = vmatprep.subr.mxu0 0.0
    %922 = vmatpush1.xpose.msra.mxu0 0.0
    %923 = vmatprep.subr.mxu0 0.0
    %924 = vmatpush1.xpose.msra.mxu0 %v891
    %925 = vmatprep.subr.mxu0 0.0
    %926 = vmatpush2.xpose.msra.mxu0 0.0
    %927 = vmatprep.subr.mxu0 0.0
    %928 = vmatpush2.xpose.msra.mxu0 0.0
    %929 = vmatprep.subr.mxu0 0.0
    %930 = vmatpush2.xpose.msra.mxu0 0.0
    %931 = vmatprep.subr.mxu0 0.0
    %932 = vmatpush2.xpose.msra.mxu0 0.0
    %933 = vmatprep.subr.mxu0 0.0
    %934 = vmatpush2.xpose.msra.mxu0 0.0
    %935 = vmatprep.subr.mxu0 0.0
    %936 = vmatpush2.xpose.msra.mxu0 0.0
    %937 = vmatprep.subr.mxu0 0.0
    %938 = vmatpush2.xpose.msra.mxu0 0.0
    %939 = vmatprep.subr.mxu0 0.0
    %940 = vmatpush2.xpose.msra.mxu0 0.0
    %941 = vmatprep.subr.mxu0 0.0
    %942 = vmatpush2.xpose.msra.mxu0 0.0
    %943 = vmatprep.subr.mxu0 0.0
    %944 = vmatpush2.xpose.msra.mxu0 0.0
    %945 = vmatprep.subr.mxu0 0.0
    %946 = vmatpush2.xpose.msra.mxu0 0.0
    %947 = vmatprep.subr.mxu0 0.0
    %948 = vmatpush2.xpose.msra.mxu0 0.0
    %949 = vmatprep.subr.mxu0 0.0
    %950 = vmatpush2.xpose.msra.mxu0 0.0
    %951 = vmatprep.subr.mxu0 0.0
    %952 = vmatpush2.xpose.msra.mxu0 0.0
    %953 = vmatprep.subr.mxu0 0.0
    %954 = vmatpush2.xpose.msra.mxu0 0.0
    %955 = vmatprep.subr.mxu0 0.0
    %956 = vmatpush2.xpose.msra.mxu0 0.0
    %957 = vmatprep.mubr.f32.mxu0 0.0
    %958 = vmatmul.mubr.f32.gmra.mxu0 %v889
    %v959 = vpop.f32.mrf.mxu0
    %v960 = vadd.f32 0.0, %v959
    %v961 = vpop.f32.mrf.mxu0
    %962 = vdwg.mxu0
    %v963 = vmul.f32 %v882, 0.35355338
    %v964 = vmul.f32 %v960, 0.35355338
    %v965 = vsel %vm147, %v963, -inf
    %966 = vmax.xlane.f32.xlu0 %v965
    %v967 = vpop.xlane.xlu0 %966
    %v968 = vsel %vm147, %v964, -inf
    %969 = vmax.xlane.f32.xlu0 %v968
    %v970 = vpop.xlane.xlu0 %969
    %v971 = vsub.f32 %v963, %v967
    %v972 = vsub.f32 %v964, %v970
    %v973 = vmul.f32 %v971, 1.442695
    %v974 = vpow.pop %v973
    %v975 = vmul.f32 %v972, 1.442695
    %v976 = vpow.pop %v975
    %v977 = vsel %vm147, %v974, 0.0
    %978 = vadd.xlane.f32.xlu0 %v977
    %v979 = vpop.xlane.xlu0 %978
    %v980 = vsel %vm147, %v976, 0.0
    %981 = vadd.xlane.f32.xlu0 %v980
    %v982 = vpop.xlane.xlu0 %981
    %v983 = vrcp.pop %v979
    %v984 = vrcp.pop %v982
    %v985 = vmul.f32 %v974, %v983
    %v986 = vmul.f32 %v976, %v984
    %987 = vrot.lane.b32.xlu0 %v136, 48
    %v988 = vpop.permute.xlu0 %987
    %v991 = vsel %vm147, %v985, 0
    %993 = vmatprep.subr.mxu0 0.0
    %994 = vmatpush1.msra.mxu0 0.0
    %995 = vmatprep.subr.mxu0 0.0
    %996 = vmatpush1.msra.mxu0 0.0
    %997 = vmatprep.subr.mxu0 0.0
    %998 = vmatpush1.msra.mxu0 0.0
    %999 = vmatprep.subr.mxu0 0.0
    %1000 = vmatpush1.msra.mxu0 0.0
    %1001 = vmatprep.subr.mxu0 0.0
    %1002 = vmatpush1.msra.mxu0 0.0
    %1003 = vmatprep.subr.mxu0 0.0
    %1004 = vmatpush1.msra.mxu0 0.0
    %1005 = vmatprep.subr.mxu0 0.0
    %1006 = vmatpush1.msra.mxu0 0.0
    %1007 = vmatprep.subr.mxu0 0.0
    %1008 = vmatpush1.msra.mxu0 0.0
    %1009 = vmatprep.subr.mxu0 0.0
    %1010 = vmatpush1.msra.mxu0 0.0
    %1011 = vmatprep.subr.mxu0 0.0
    %1012 = vmatpush1.msra.mxu0 0.0
    %1013 = vmatprep.subr.mxu0 0.0
    %1014 = vmatpush1.msra.mxu0 0.0
    %1015 = vmatprep.subr.mxu0 0.0
    %1016 = vmatpush1.msra.mxu0 0.0
    %1017 = vmatprep.subr.mxu0 0.0
    %1018 = vmatpush1.msra.mxu0 0.0
    %1019 = vmatprep.subr.mxu0 0.0
    %1020 = vmatpush1.msra.mxu0 0.0
    %1021 = vmatprep.subr.mxu0 0.0
    %1022 = vmatpush1.msra.mxu0 0.0
    %1023 = vmatprep.subr.mxu0 0.0
    %1024 = vmatpush1.msra.mxu0 %v988
    %1025 = vmatprep.subr.mxu0 0.0
    %1026 = vmatpush2.msra.mxu0 0.0
    %1027 = vmatprep.subr.mxu0 0.0
    %1028 = vmatpush2.msra.mxu0 0.0
    %1029 = vmatprep.subr.mxu0 0.0
    %1030 = vmatpush2.msra.mxu0 0.0
    %1031 = vmatprep.subr.mxu0 0.0
    %1032 = vmatpush2.msra.mxu0 0.0
    %1033 = vmatprep.subr.mxu0 0.0
    %1034 = vmatpush2.msra.mxu0 0.0
    %1035 = vmatprep.subr.mxu0 0.0
    %1036 = vmatpush2.msra.mxu0 0.0
    %1037 = vmatprep.subr.mxu0 0.0
    %1038 = vmatpush2.msra.mxu0 0.0
    %1039 = vmatprep.subr.mxu0 0.0
    %1040 = vmatpush2.msra.mxu0 0.0
    %1041 = vmatprep.subr.mxu0 0.0
    %1042 = vmatpush2.msra.mxu0 0.0
    %1043 = vmatprep.subr.mxu0 0.0
    %1044 = vmatpush2.msra.mxu0 0.0
    %1045 = vmatprep.subr.mxu0 0.0
    %1046 = vmatpush2.msra.mxu0 0.0
    %1047 = vmatprep.subr.mxu0 0.0
    %1048 = vmatpush2.msra.mxu0 0.0
    %1049 = vmatprep.subr.mxu0 0.0
    %1050 = vmatpush2.msra.mxu0 0.0
    %1051 = vmatprep.subr.mxu0 0.0
    %1052 = vmatpush2.msra.mxu0 0.0
    %1053 = vmatprep.subr.mxu0 0.0
    %1054 = vmatpush2.msra.mxu0 0.0
    %1055 = vmatprep.subr.mxu0 0.0
    %1056 = vmatpush2.msra.mxu0 0.0
    %1057 = vmatprep.mubr.f32.mxu0 0.0
    %1058 = vmatmul.mubr.f32.gmra.mxu0 %v991
    %v1059 = vpop.f32.mrf.mxu0
    %v1060 = vadd.f32 0.0, %v1059
    %v1061 = vpop.f32.mrf.mxu0
    %1062 = vdwg.mxu0
    %1063 = vrot.lane.b32.xlu0 %v141, 48
    %v1064 = vpop.permute.xlu0 %1063
    %v1067 = vsel %vm147, %v986, 0
    %1069 = vmatprep.subr.mxu0 0.0
    %1070 = vmatpush1.msra.mxu0 0.0
    %1071 = vmatprep.subr.mxu0 0.0
    %1072 = vmatpush1.msra.mxu0 0.0
    %1073 = vmatprep.subr.mxu0 0.0
    %1074 = vmatpush1.msra.mxu0 0.0
    %1075 = vmatprep.subr.mxu0 0.0
    %1076 = vmatpush1.msra.mxu0 0.0
    %1077 = vmatprep.subr.mxu0 0.0
    %1078 = vmatpush1.msra.mxu0 0.0
    %1079 = vmatprep.subr.mxu0 0.0
    %1080 = vmatpush1.msra.mxu0 0.0
    %1081 = vmatprep.subr.mxu0 0.0
    %1082 = vmatpush1.msra.mxu0 0.0
    %1083 = vmatprep.subr.mxu0 0.0
    %1084 = vmatpush1.msra.mxu0 0.0
    %1085 = vmatprep.subr.mxu0 0.0
    %1086 = vmatpush1.msra.mxu0 0.0
    %1087 = vmatprep.subr.mxu0 0.0
    %1088 = vmatpush1.msra.mxu0 0.0
    %1089 = vmatprep.subr.mxu0 0.0
    %1090 = vmatpush1.msra.mxu0 0.0
    %1091 = vmatprep.subr.mxu0 0.0
    %1092 = vmatpush1.msra.mxu0 0.0
    %1093 = vmatprep.subr.mxu0 0.0
    %1094 = vmatpush1.msra.mxu0 0.0
    %1095 = vmatprep.subr.mxu0 0.0
    %1096 = vmatpush1.msra.mxu0 0.0
    %1097 = vmatprep.subr.mxu0 0.0
    %1098 = vmatpush1.msra.mxu0 0.0
    %1099 = vmatprep.subr.mxu0 0.0
    %1100 = vmatpush1.msra.mxu0 %v1064
    %1101 = vmatprep.subr.mxu0 0.0
    %1102 = vmatpush2.msra.mxu0 0.0
    %1103 = vmatprep.subr.mxu0 0.0
    %1104 = vmatpush2.msra.mxu0 0.0
    %1105 = vmatprep.subr.mxu0 0.0
    %1106 = vmatpush2.msra.mxu0 0.0
    %1107 = vmatprep.subr.mxu0 0.0
    %1108 = vmatpush2.msra.mxu0 0.0
    %1109 = vmatprep.subr.mxu0 0.0
    %1110 = vmatpush2.msra.mxu0 0.0
    %1111 = vmatprep.subr.mxu0 0.0
    %1112 = vmatpush2.msra.mxu0 0.0
    %1113 = vmatprep.subr.mxu0 0.0
    %1114 = vmatpush2.msra.mxu0 0.0
    %1115 = vmatprep.subr.mxu0 0.0
    %1116 = vmatpush2.msra.mxu0 0.0
    %1117 = vmatprep.subr.mxu0 0.0
    %1118 = vmatpush2.msra.mxu0 0.0
    %1119 = vmatprep.subr.mxu0 0.0
    %1120 = vmatpush2.msra.mxu0 0.0
    %1121 = vmatprep.subr.mxu0 0.0
    %1122 = vmatpush2.msra.mxu0 0.0
    %1123 = vmatprep.subr.mxu0 0.0
    %1124 = vmatpush2.msra.mxu0 0.0
    %1125 = vmatprep.subr.mxu0 0.0
    %1126 = vmatpush2.msra.mxu0 0.0
    %1127 = vmatprep.subr.mxu0 0.0
    %1128 = vmatpush2.msra.mxu0 0.0
    %1129 = vmatprep.subr.mxu0 0.0
    %1130 = vmatpush2.msra.mxu0 0.0
    %1131 = vmatprep.subr.mxu0 0.0
    %1132 = vmatpush2.msra.mxu0 0.0
    %1133 = vmatprep.mubr.f32.mxu0 0.0
    %1134 = vmatmul.mubr.f32.gmra.mxu0 %v1067
    %v1135 = vpop.f32.mrf.mxu0
    %v1136 = vadd.f32 0.0, %v1135
    %v1137 = vpop.f32.mrf.mxu0
    %1138 = vdwg.mxu0
    %1139 = vrot.lane.b32.xlu0 %v136, 104
    %v1140 = vpop.permute.xlu0 %1139
    %1141 = vrot.lane.b32.xlu0 %v136, 72
    %v1142 = vpop.permute.xlu0 %1141
    %v1143 = vsel %vm147, %v1140, 0
    %v1145 = vsel %vm147, %v1142, 0
    %1147 = vmatprep.subr.mxu0 0.0
    %1148 = vmatpush1.xpose.msra.mxu0 0.0
    %1149 = vmatprep.subr.mxu0 0.0
    %1150 = vmatpush1.xpose.msra.mxu0 0.0
    %1151 = vmatprep.subr.mxu0 0.0
    %1152 = vmatpush1.xpose.msra.mxu0 0.0
    %1153 = vmatprep.subr.mxu0 0.0
    %1154 = vmatpush1.xpose.msra.mxu0 0.0
    %1155 = vmatprep.subr.mxu0 0.0
    %1156 = vmatpush1.xpose.msra.mxu0 0.0
    %1157 = vmatprep.subr.mxu0 0.0
    %1158 = vmatpush1.xpose.msra.mxu0 0.0
    %1159 = vmatprep.subr.mxu0 0.0
    %1160 = vmatpush1.xpose.msra.mxu0 0.0
    %1161 = vmatprep.subr.mxu0 0.0
    %1162 = vmatpush1.xpose.msra.mxu0 0.0
    %1163 = vmatprep.subr.mxu0 0.0
    %1164 = vmatpush1.xpose.msra.mxu0 0.0
    %1165 = vmatprep.subr.mxu0 0.0
    %1166 = vmatpush1.xpose.msra.mxu0 0.0
    %1167 = vmatprep.subr.mxu0 0.0
    %1168 = vmatpush1.xpose.msra.mxu0 0.0
    %1169 = vmatprep.subr.mxu0 0.0
    %1170 = vmatpush1.xpose.msra.mxu0 0.0
    %1171 = vmatprep.subr.mxu0 0.0
    %1172 = vmatpush1.xpose.msra.mxu0 0.0
    %1173 = vmatprep.subr.mxu0 0.0
    %1174 = vmatpush1.xpose.msra.mxu0 0.0
    %1175 = vmatprep.subr.mxu0 0.0
    %1176 = vmatpush1.xpose.msra.mxu0 0.0
    %1177 = vmatprep.subr.mxu0 0.0
    %1178 = vmatpush1.xpose.msra.mxu0 %v1145
    %1179 = vmatprep.subr.mxu0 0.0
    %1180 = vmatpush2.xpose.msra.mxu0 0.0
    %1181 = vmatprep.subr.mxu0 0.0
    %1182 = vmatpush2.xpose.msra.mxu0 0.0
    %1183 = vmatprep.subr.mxu0 0.0
    %1184 = vmatpush2.xpose.msra.mxu0 0.0
    %1185 = vmatprep.subr.mxu0 0.0
    %1186 = vmatpush2.xpose.msra.mxu0 0.0
    %1187 = vmatprep.subr.mxu0 0.0
    %1188 = vmatpush2.xpose.msra.mxu0 0.0
    %1189 = vmatprep.subr.mxu0 0.0
    %1190 = vmatpush2.xpose.msra.mxu0 0.0
    %1191 = vmatprep.subr.mxu0 0.0
    %1192 = vmatpush2.xpose.msra.mxu0 0.0
    %1193 = vmatprep.subr.mxu0 0.0
    %1194 = vmatpush2.xpose.msra.mxu0 0.0
    %1195 = vmatprep.subr.mxu0 0.0
    %1196 = vmatpush2.xpose.msra.mxu0 0.0
    %1197 = vmatprep.subr.mxu0 0.0
    %1198 = vmatpush2.xpose.msra.mxu0 0.0
    %1199 = vmatprep.subr.mxu0 0.0
    %1200 = vmatpush2.xpose.msra.mxu0 0.0
    %1201 = vmatprep.subr.mxu0 0.0
    %1202 = vmatpush2.xpose.msra.mxu0 0.0
    %1203 = vmatprep.subr.mxu0 0.0
    %1204 = vmatpush2.xpose.msra.mxu0 0.0
    %1205 = vmatprep.subr.mxu0 0.0
    %1206 = vmatpush2.xpose.msra.mxu0 0.0
    %1207 = vmatprep.subr.mxu0 0.0
    %1208 = vmatpush2.xpose.msra.mxu0 0.0
    %1209 = vmatprep.subr.mxu0 0.0
    %1210 = vmatpush2.xpose.msra.mxu0 0.0
    %1211 = vmatprep.mubr.f32.mxu0 0.0
    %1212 = vmatmul.mubr.f32.gmra.mxu0 %v1143
    %v1213 = vpop.f32.mrf.mxu0
    %v1214 = vadd.f32 0.0, %v1213
    %v1215 = vpop.f32.mrf.mxu0
    %1216 = vdwg.mxu0
    %1217 = vrot.lane.b32.xlu0 %v141, 104
    %v1218 = vpop.permute.xlu0 %1217
    %1219 = vrot.lane.b32.xlu0 %v141, 72
    %v1220 = vpop.permute.xlu0 %1219
    %v1221 = vsel %vm147, %v1218, 0
    %v1223 = vsel %vm147, %v1220, 0
    %1225 = vmatprep.subr.mxu0 0.0
    %1226 = vmatpush1.xpose.msra.mxu0 0.0
    %1227 = vmatprep.subr.mxu0 0.0
    %1228 = vmatpush1.xpose.msra.mxu0 0.0
    %1229 = vmatprep.subr.mxu0 0.0
    %1230 = vmatpush1.xpose.msra.mxu0 0.0
    %1231 = vmatprep.subr.mxu0 0.0
    %1232 = vmatpush1.xpose.msra.mxu0 0.0
    %1233 = vmatprep.subr.mxu0 0.0
    %1234 = vmatpush1.xpose.msra.mxu0 0.0
    %1235 = vmatprep.subr.mxu0 0.0
    %1236 = vmatpush1.xpose.msra.mxu0 0.0
    %1237 = vmatprep.subr.mxu0 0.0
    %1238 = vmatpush1.xpose.msra.mxu0 0.0
    %1239 = vmatprep.subr.mxu0 0.0
    %1240 = vmatpush1.xpose.msra.mxu0 0.0
    %1241 = vmatprep.subr.mxu0 0.0
    %1242 = vmatpush1.xpose.msra.mxu0 0.0
    %1243 = vmatprep.subr.mxu0 0.0
    %1244 = vmatpush1.xpose.msra.mxu0 0.0
    %1245 = vmatprep.subr.mxu0 0.0
    %1246 = vmatpush1.xpose.msra.mxu0 0.0
    %1247 = vmatprep.subr.mxu0 0.0
    %1248 = vmatpush1.xpose.msra.mxu0 0.0
    %1249 = vmatprep.subr.mxu0 0.0
    %1250 = vmatpush1.xpose.msra.mxu0 0.0
    %1251 = vmatprep.subr.mxu0 0.0
    %1252 = vmatpush1.xpose.msra.mxu0 0.0
    %1253 = vmatprep.subr.mxu0 0.0
    %1254 = vmatpush1.xpose.msra.mxu0 0.0
    %1255 = vmatprep.subr.mxu0 0.0
    %1256 = vmatpush1.xpose.msra.mxu0 %v1223
    %1257 = vmatprep.subr.mxu0 0.0
    %1258 = vmatpush2.xpose.msra.mxu0 0.0
    %1259 = vmatprep.subr.mxu0 0.0
    %1260 = vmatpush2.xpose.msra.mxu0 0.0
    %1261 = vmatprep.subr.mxu0 0.0
    %1262 = vmatpush2.xpose.msra.mxu0 0.0
    %1263 = vmatprep.subr.mxu0 0.0
    %1264 = vmatpush2.xpose.msra.mxu0 0.0
    %1265 = vmatprep.subr.mxu0 0.0
    %1266 = vmatpush2.xpose.msra.mxu0 0.0
    %1267 = vmatprep.subr.mxu0 0.0
    %1268 = vmatpush2.xpose.msra.mxu0 0.0
    %1269 = vmatprep.subr.mxu0 0.0
    %1270 = vmatpush2.xpose.msra.mxu0 0.0
    %1271 = vmatprep.subr.mxu0 0.0
    %1272 = vmatpush2.xpose.msra.mxu0 0.0
    %1273 = vmatprep.subr.mxu0 0.0
    %1274 = vmatpush2.xpose.msra.mxu0 0.0
    %1275 = vmatprep.subr.mxu0 0.0
    %1276 = vmatpush2.xpose.msra.mxu0 0.0
    %1277 = vmatprep.subr.mxu0 0.0
    %1278 = vmatpush2.xpose.msra.mxu0 0.0
    %1279 = vmatprep.subr.mxu0 0.0
    %1280 = vmatpush2.xpose.msra.mxu0 0.0
    %1281 = vmatprep.subr.mxu0 0.0
    %1282 = vmatpush2.xpose.msra.mxu0 0.0
    %1283 = vmatprep.subr.mxu0 0.0
    %1284 = vmatpush2.xpose.msra.mxu0 0.0
    %1285 = vmatprep.subr.mxu0 0.0
    %1286 = vmatpush2.xpose.msra.mxu0 0.0
    %1287 = vmatprep.subr.mxu0 0.0
    %1288 = vmatpush2.xpose.msra.mxu0 0.0
    %1289 = vmatprep.mubr.f32.mxu0 0.0
    %1290 = vmatmul.mubr.f32.gmra.mxu0 %v1221
    %v1291 = vpop.f32.mrf.mxu0
    %v1292 = vadd.f32 0.0, %v1291
    %v1293 = vpop.f32.mrf.mxu0
    %1294 = vdwg.mxu0
    %v1295 = vmul.f32 %v1214, 0.35355338
    %v1296 = vmul.f32 %v1292, 0.35355338
    %v1297 = vsel %vm147, %v1295, -inf
    %1298 = vmax.xlane.f32.xlu0 %v1297
    %v1299 = vpop.xlane.xlu0 %1298
    %v1300 = vsel %vm147, %v1296, -inf
    %1301 = vmax.xlane.f32.xlu0 %v1300
    %v1302 = vpop.xlane.xlu0 %1301
    %v1303 = vsub.f32 %v1295, %v1299
    %v1304 = vsub.f32 %v1296, %v1302
    %v1305 = vmul.f32 %v1303, 1.442695
    %v1306 = vpow.pop %v1305
    %v1307 = vmul.f32 %v1304, 1.442695
    %v1308 = vpow.pop %v1307
    %v1309 = vsel %vm147, %v1306, 0.0
    %1310 = vadd.xlane.f32.xlu0 %v1309
    %v1311 = vpop.xlane.xlu0 %1310
    %v1312 = vsel %vm147, %v1308, 0.0
    %1313 = vadd.xlane.f32.xlu0 %v1312
    %v1314 = vpop.xlane.xlu0 %1313
    %v1315 = vrcp.pop %v1311
    %v1316 = vrcp.pop %v1314
    %v1317 = vmul.f32 %v1306, %v1315
    %v1318 = vmul.f32 %v1308, %v1316
    %1319 = vrot.lane.b32.xlu0 %v136, 40
    %v1320 = vpop.permute.xlu0 %1319
    %v1323 = vsel %vm147, %v1317, 0
    %1325 = vmatprep.subr.mxu0 0.0
    %1326 = vmatpush1.msra.mxu0 0.0
    %1327 = vmatprep.subr.mxu0 0.0
    %1328 = vmatpush1.msra.mxu0 0.0
    %1329 = vmatprep.subr.mxu0 0.0
    %1330 = vmatpush1.msra.mxu0 0.0
    %1331 = vmatprep.subr.mxu0 0.0
    %1332 = vmatpush1.msra.mxu0 0.0
    %1333 = vmatprep.subr.mxu0 0.0
    %1334 = vmatpush1.msra.mxu0 0.0
    %1335 = vmatprep.subr.mxu0 0.0
    %1336 = vmatpush1.msra.mxu0 0.0
    %1337 = vmatprep.subr.mxu0 0.0
    %1338 = vmatpush1.msra.mxu0 0.0
    %1339 = vmatprep.subr.mxu0 0.0
    %1340 = vmatpush1.msra.mxu0 0.0
    %1341 = vmatprep.subr.mxu0 0.0
    %1342 = vmatpush1.msra.mxu0 0.0
    %1343 = vmatprep.subr.mxu0 0.0
    %1344 = vmatpush1.msra.mxu0 0.0
    %1345 = vmatprep.subr.mxu0 0.0
    %1346 = vmatpush1.msra.mxu0 0.0
    %1347 = vmatprep.subr.mxu0 0.0
    %1348 = vmatpush1.msra.mxu0 0.0
    %1349 = vmatprep.subr.mxu0 0.0
    %1350 = vmatpush1.msra.mxu0 0.0
    %1351 = vmatprep.subr.mxu0 0.0
    %1352 = vmatpush1.msra.mxu0 0.0
    %1353 = vmatprep.subr.mxu0 0.0
    %1354 = vmatpush1.msra.mxu0 0.0
    %1355 = vmatprep.subr.mxu0 0.0
    %1356 = vmatpush1.msra.mxu0 %v1320
    %1357 = vmatprep.subr.mxu0 0.0
    %1358 = vmatpush2.msra.mxu0 0.0
    %1359 = vmatprep.subr.mxu0 0.0
    %1360 = vmatpush2.msra.mxu0 0.0
    %1361 = vmatprep.subr.mxu0 0.0
    %1362 = vmatpush2.msra.mxu0 0.0
    %1363 = vmatprep.subr.mxu0 0.0
    %1364 = vmatpush2.msra.mxu0 0.0
    %1365 = vmatprep.subr.mxu0 0.0
    %1366 = vmatpush2.msra.mxu0 0.0
    %1367 = vmatprep.subr.mxu0 0.0
    %1368 = vmatpush2.msra.mxu0 0.0
    %1369 = vmatprep.subr.mxu0 0.0
    %1370 = vmatpush2.msra.mxu0 0.0
    %1371 = vmatprep.subr.mxu0 0.0
    %1372 = vmatpush2.msra.mxu0 0.0
    %1373 = vmatprep.subr.mxu0 0.0
    %1374 = vmatpush2.msra.mxu0 0.0
    %1375 = vmatprep.subr.mxu0 0.0
    %1376 = vmatpush2.msra.mxu0 0.0
    %1377 = vmatprep.subr.mxu0 0.0
    %1378 = vmatpush2.msra.mxu0 0.0
    %1379 = vmatprep.subr.mxu0 0.0
    %1380 = vmatpush2.msra.mxu0 0.0
    %1381 = vmatprep.subr.mxu0 0.0
    %1382 = vmatpush2.msra.mxu0 0.0
    %1383 = vmatprep.subr.mxu0 0.0
    %1384 = vmatpush2.msra.mxu0 0.0
    %1385 = vmatprep.subr.mxu0 0.0
    %1386 = vmatpush2.msra.mxu0 0.0
    %1387 = vmatprep.subr.mxu0 0.0
    %1388 = vmatpush2.msra.mxu0 0.0
    %1389 = vmatprep.mubr.f32.mxu0 0.0
    %1390 = vmatmul.mubr.f32.gmra.mxu0 %v1323
    %v1391 = vpop.f32.mrf.mxu0
    %v1392 = vadd.f32 0.0, %v1391
    %v1393 = vpop.f32.mrf.mxu0
    %1394 = vdwg.mxu0
    %1395 = vrot.lane.b32.xlu0 %v141, 40
    %v1396 = vpop.permute.xlu0 %1395
    %v1399 = vsel %vm147, %v1318, 0
    %1401 = vmatprep.subr.mxu0 0.0
    %1402 = vmatpush1.msra.mxu0 0.0
    %1403 = vmatprep.subr.mxu0 0.0
    %1404 = vmatpush1.msra.mxu0 0.0
    %1405 = vmatprep.subr.mxu0 0.0
    %1406 = vmatpush1.msra.mxu0 0.0
    %1407 = vmatprep.subr.mxu0 0.0
    %1408 = vmatpush1.msra.mxu0 0.0
    %1409 = vmatprep.subr.mxu0 0.0
    %1410 = vmatpush1.msra.mxu0 0.0
    %1411 = vmatprep.subr.mxu0 0.0
    %1412 = vmatpush1.msra.mxu0 0.0
    %1413 = vmatprep.subr.mxu0 0.0
    %1414 = vmatpush1.msra.mxu0 0.0
    %1415 = vmatprep.subr.mxu0 0.0
    %1416 = vmatpush1.msra.mxu0 0.0
    %1417 = vmatprep.subr.mxu0 0.0
    %1418 = vmatpush1.msra.mxu0 0.0
    %1419 = vmatprep.subr.mxu0 0.0
    %1420 = vmatpush1.msra.mxu0 0.0
    %1421 = vmatprep.subr.mxu0 0.0
    %1422 = vmatpush1.msra.mxu0 0.0
    %1423 = vmatprep.subr.mxu0 0.0
    %1424 = vmatpush1.msra.mxu0 0.0
    %1425 = vmatprep.subr.mxu0 0.0
    %1426 = vmatpush1.msra.mxu0 0.0
    %1427 = vmatprep.subr.mxu0 0.0
    %1428 = vmatpush1.msra.mxu0 0.0
    %1429 = vmatprep.subr.mxu0 0.0
    %1430 = vmatpush1.msra.mxu0 0.0
    %1431 = vmatprep.subr.mxu0 0.0
    %1432 = vmatpush1.msra.mxu0 %v1396
    %1433 = vmatprep.subr.mxu0 0.0
    %1434 = vmatpush2.msra.mxu0 0.0
    %1435 = vmatprep.subr.mxu0 0.0
    %1436 = vmatpush2.msra.mxu0 0.0
    %1437 = vmatprep.subr.mxu0 0.0
    %1438 = vmatpush2.msra.mxu0 0.0
    %1439 = vmatprep.subr.mxu0 0.0
    %1440 = vmatpush2.msra.mxu0 0.0
    %1441 = vmatprep.subr.mxu0 0.0
    %1442 = vmatpush2.msra.mxu0 0.0
    %1443 = vmatprep.subr.mxu0 0.0
    %1444 = vmatpush2.msra.mxu0 0.0
    %1445 = vmatprep.subr.mxu0 0.0
    %1446 = vmatpush2.msra.mxu0 0.0
    %1447 = vmatprep.subr.mxu0 0.0
    %1448 = vmatpush2.msra.mxu0 0.0
    %1449 = vmatprep.subr.mxu0 0.0
    %1450 = vmatpush2.msra.mxu0 0.0
    %1451 = vmatprep.subr.mxu0 0.0
    %1452 = vmatpush2.msra.mxu0 0.0
    %1453 = vmatprep.subr.mxu0 0.0
    %1454 = vmatpush2.msra.mxu0 0.0
    %1455 = vmatprep.subr.mxu0 0.0
    %1456 = vmatpush2.msra.mxu0 0.0
    %1457 = vmatprep.subr.mxu0 0.0
    %1458 = vmatpush2.msra.mxu0 0.0
    %1459 = vmatprep.subr.mxu0 0.0
    %1460 = vmatpush2.msra.mxu0 0.0
    %1461 = vmatprep.subr.mxu0 0.0
    %1462 = vmatpush2.msra.mxu0 0.0
    %1463 = vmatprep.subr.mxu0 0.0
    %1464 = vmatpush2.msra.mxu0 0.0
    %1465 = vmatprep.mubr.f32.mxu0 0.0
    %1466 = vmatmul.mubr.f32.gmra.mxu0 %v1399
    %v1467 = vpop.f32.mrf.mxu0
    %v1468 = vadd.f32 0.0, %v1467
    %v1469 = vpop.f32.mrf.mxu0
    %1470 = vdwg.mxu0
    %1471 = vrot.lane.b32.xlu0 %v653, 8
    %v1472 = vpop.permute.xlu0 %1471
    %1473 = vrot.lane.b32.xlu0 %v654, 8
    %v1474 = vpop.permute.xlu0 %1473
    %1477 = vrot.lane.b32.xlu0 %v985, 16
    %v1478 = vpop.permute.xlu0 %1477
    %1479 = vrot.lane.b32.xlu0 %v986, 16
    %v1480 = vpop.permute.xlu0 %1479
    %1483 = vrot.lane.b32.xlu0 %v1317, 24
    %v1484 = vpop.permute.xlu0 %1483
    %1485 = vrot.lane.b32.xlu0 %v1318, 24
    %v1486 = vpop.permute.xlu0 %1485
    %v1489 = vsel %vm147, %v321, %v1472
    %v1490 = vsel %vm147, %v322, %v1474
    %vm1491 = vcmask 130048
    %v1492 = vsel %vm1491, %v1489, %v1478
    %v1493 = vsel %vm1491, %v1490, %v1480
    %vm1494 = vcmask 195584
    %v1495 = vsel %vm1494, %v1492, %v1484
    %v1496 = vsel %vm1494, %v1493, %v1486
    %1497 = vst.msk [vmem:[%s14] sm:$0xff] %vm62, %v1495
    %1498 = vst.msk [vmem:[%s14 + $0x8] sm:$0xff] %vm62, %v1496
    %1501 = vrot.lane.b32.xlu0 %v728, 8
    %v1502 = vpop.permute.xlu0 %1501
    %1503 = vrot.lane.b32.xlu0 %v804, 8
    %v1504 = vpop.permute.xlu0 %1503
    %1509 = vrot.lane.b32.xlu0 %v1060, 16
    %v1510 = vpop.permute.xlu0 %1509
    %1511 = vrot.lane.b32.xlu0 %v1136, 16
    %v1512 = vpop.permute.xlu0 %1511
    %1517 = vrot.lane.b32.xlu0 %v1392, 24
    %v1518 = vpop.permute.xlu0 %1517
    %1519 = vrot.lane.b32.xlu0 %v1468, 24
    %v1520 = vpop.permute.xlu0 %1519
    %v1523 = vsel %vm147, %v396, %v1502
    %v1524 = vsel %vm147, %v472, %v1504
    %v1525 = vsel %vm1491, %v1523, %v1510
    %v1526 = vsel %vm1491, %v1524, %v1512
    %v1527 = vsel %vm1494, %v1525, %v1518
    %v1528 = vsel %vm1494, %v1526, %v1520
    %1529 = vst.msk [vmem:[#allocation4] sm:$0xff] %vm62, %v1527
    %1530 = vst.msk [vmem:[#allocation4 + $0x8] sm:$0xff] %vm62, %v1528
    %v1531 = vld [vmem:[%s3] sm:$0xff]
    %v1532 = vld [vmem:[%s3 + $0x8] sm:$0xff]
    %v1533 = vld [vmem:[%s3 + $0x10] sm:$0xff]
    %v1534 = vld [vmem:[%s3 + $0x18] sm:$0xff]
    %v1535 = vld [vmem:[%s4] sm:$0x1]
    %v1537 = vlaneseq
    %v1538 = vshrl.u32 %v1537, 7
    %v1539 = vsub.s32 0, %v1538
    %v1540 = vrot.slane %v1535, %v1539
    %v1543 = vsel %vm62, %v1527, 0
    %v1546 = vsel %vm62, %v1528, 0
    %1548 = vmatprep.subr.mxu0 0.0
    %1549 = vmatpush1.msra.mxu0 0.0
    %1550 = vmatprep.subr.mxu0 0.0
    %1551 = vmatpush1.msra.mxu0 0.0
    %1552 = vmatprep.subr.mxu0 0.0
    %1553 = vmatpush1.msra.mxu0 0.0
    %1554 = vmatprep.subr.mxu0 0.0
    %1555 = vmatpush1.msra.mxu0 0.0
    %1556 = vmatprep.subr.mxu0 0.0
    %1557 = vmatpush1.msra.mxu0 0.0
    %1558 = vmatprep.subr.mxu0 0.0
    %1559 = vmatpush1.msra.mxu0 0.0
    %1560 = vmatprep.subr.mxu0 0.0
    %1561 = vmatpush1.msra.mxu0 0.0
    %1562 = vmatprep.subr.mxu0 0.0
    %1563 = vmatpush1.msra.mxu0 0.0
    %1564 = vmatprep.subr.mxu0 0.0
    %1565 = vmatpush1.msra.mxu0 0.0
    %1566 = vmatprep.subr.mxu0 0.0
    %1567 = vmatpush1.msra.mxu0 0.0
    %1568 = vmatprep.subr.mxu0 0.0
    %1569 = vmatpush1.msra.mxu0 0.0
    %1570 = vmatprep.subr.mxu0 0.0
    %1571 = vmatpush1.msra.mxu0 0.0
    %1572 = vmatprep.subr.mxu0 0.0
    %1573 = vmatpush1.msra.mxu0 %v1534
    %1574 = vmatprep.subr.mxu0 0.0
    %1575 = vmatpush1.msra.mxu0 %v1533
    %1576 = vmatprep.subr.mxu0 0.0
    %1577 = vmatpush1.msra.mxu0 %v1532
    %1578 = vmatprep.subr.mxu0 0.0
    %1579 = vmatpush1.msra.mxu0 %v1531
    %1580 = vmatprep.subr.mxu0 0.0
    %1581 = vmatpush2.msra.mxu0 0.0
    %1582 = vmatprep.subr.mxu0 0.0
    %1583 = vmatpush2.msra.mxu0 0.0
    %1584 = vmatprep.subr.mxu0 0.0
    %1585 = vmatpush2.msra.mxu0 0.0
    %1586 = vmatprep.subr.mxu0 0.0
    %1587 = vmatpush2.msra.mxu0 0.0
    %1588 = vmatprep.subr.mxu0 0.0
    %1589 = vmatpush2.msra.mxu0 0.0
    %1590 = vmatprep.subr.mxu0 0.0
    %1591 = vmatpush2.msra.mxu0 0.0
    %1592 = vmatprep.subr.mxu0 0.0
    %1593 = vmatpush2.msra.mxu0 0.0
    %1594 = vmatprep.subr.mxu0 0.0
    %1595 = vmatpush2.msra.mxu0 0.0
    %1596 = vmatprep.subr.mxu0 0.0
    %1597 = vmatpush2.msra.mxu0 0.0
    %1598 = vmatprep.subr.mxu0 0.0
    %1599 = vmatpush2.msra.mxu0 0.0
    %1600 = vmatprep.subr.mxu0 0.0
    %1601 = vmatpush2.msra.mxu0 0.0
    %1602 = vmatprep.subr.mxu0 0.0
    %1603 = vmatpush2.msra.mxu0 0.0
    %1604 = vmatprep.subr.mxu0 0.0
    %1605 = vmatpush2.msra.mxu0 0.0
    %1606 = vmatprep.subr.mxu0 0.0
    %1607 = vmatpush2.msra.mxu0 0.0
    %1608 = vmatprep.subr.mxu0 0.0
    %1609 = vmatpush2.msra.mxu0 0.0
    %1610 = vmatprep.subr.mxu0 0.0
    %1611 = vmatpush2.msra.mxu0 0.0
    %1612 = vmatprep.mubr.f32.mxu0 0.0
    %1613 = vmatmul.mubr.f32.gmra.mxu0 %v1543
    %v1614 = vpop.f32.mrf.mxu0
    %v1615 = vadd.f32 %v1540, %v1614
    %v1616 = vpop.f32.mrf.mxu0
    %1617 = vmatprep.mubr.f32.mxu0 0.0
    %1618 = vmatmul.mubr.f32.gmra.mxu0 %v1546
    %v1619 = vpop.f32.mrf.mxu0
    %v1620 = vadd.f32 %v1540, %v1619
    %v1621 = vpop.f32.mrf.mxu0
    %1622 = vdwg.mxu0
    %v1623 = vadd.f32 %v49, %v1615
    %v1624 = vadd.f32 %v50, %v1620
    %v1625 = vsel %vm62, %v1623, 0.0
    %1626 = vadd.xlane.f32.xlu0 %v1625
    %v1627 = vpop.xlane.xlu0 %1626
    %v1628 = vsel %vm62, %v1624, 0.0
    %1629 = vadd.xlane.f32.xlu0 %v1628
    %v1630 = vpop.xlane.xlu0 %1629
    %v1631 = vrcp.pop 32.0
    %v1632 = vmul.f32 %v1627, %v1631
    %v1633 = vmul.f32 %v1630, %v1631
    %v1634 = vsub.f32 %v1623, %v1632
    %v1635 = vsub.f32 %v1624, %v1633
    %v1636 = vmul.f32 %v1634, %v1634
    %v1637 = vmul.f32 %v1635, %v1635
    %v1638 = vsel %vm62, %v1636, 0.0
    %1639 = vadd.xlane.f32.xlu0 %v1638
    %v1640 = vpop.xlane.xlu0 %1639
    %v1641 = vsel %vm62, %v1637, 0.0
    %1642 = vadd.xlane.f32.xlu0 %v1641
    %v1643 = vpop.xlane.xlu0 %1642
    %v1644 = vmul.f32 %v1640, %v1631
    %v1645 = vmul.f32 %v1643, %v1631
    %v1646 = vadd.f32 %v1644, 1e-06
    %v1647 = vadd.f32 %v1645, 1e-06
    %v1648 = vrsqrt.pop %v1646
    %v1649 = vrsqrt.pop %v1647
    %v1650 = vmul.f32 %v1634, %v1648
    %v1651 = vmul.f32 %v1635, %v1649
    %v1652 = vld [vmem:[%s5] sm:$0x1]
    %v1654 = vlaneseq
    %v1655 = vshrl.u32 %v1654, 7
    %v1656 = vsub.s32 0, %v1655
    %v1657 = vrot.slane %v1652, %v1656
    %v1659 = vmul.f32 %v1650, %v1657
    %v1660 = vmul.f32 %v1651, %v1657
    %v1661 = vld [vmem:[%s6] sm:$0x1]
    %v1663 = vlaneseq
    %v1664 = vshrl.u32 %v1663, 7
    %v1665 = vsub.s32 0, %v1664
    %v1666 = vrot.slane %v1661, %v1665
    %v1668 = vadd.f32 %v1659, %v1666
    %v1669 = vadd.f32 %v1660, %v1666
    %v1670 = vld [vmem:[%s7] sm:$0xff]
    %v1671 = vld [vmem:[%s7 + $0x8] sm:$0xff]
    %v1672 = vld [vmem:[%s7 + $0x10] sm:$0xff]
    %v1673 = vld [vmem:[%s7 + $0x18] sm:$0xff]
    %v1674 = vld [vmem:[%s8] sm:$0x1]
    %v1676 = vlaneseq
    %v1677 = vshrl.u32 %v1676, 7
    %v1678 = vsub.s32 0, %v1677
    %v1679 = vrot.slane %v1674, %v1678
    %v1682 = vsel %vm62, %v1668, 0
    %v1685 = vsel %vm62, %v1669, 0
    %1687 = vmatprep.subr.mxu0 0.0
    %1688 = vmatpush1.msra.mxu0 0.0
    %1689 = vmatprep.subr.mxu0 0.0
    %1690 = vmatpush1.msra.mxu0 0.0
    %1691 = vmatprep.subr.mxu0 0.0
    %1692 = vmatpush1.msra.mxu0 0.0
    %1693 = vmatprep.subr.mxu0 0.0
    %1694 = vmatpush1.msra.mxu0 0.0
    %1695 = vmatprep.subr.mxu0 0.0
    %1696 = vmatpush1.msra.mxu0 0.0
    %1697 = vmatprep.subr.mxu0 0.0
    %1698 = vmatpush1.msra.mxu0 0.0
    %1699 = vmatprep.subr.mxu0 0.0
    %1700 = vmatpush1.msra.mxu0 0.0
    %1701 = vmatprep.subr.mxu0 0.0
    %1702 = vmatpush1.msra.mxu0 0.0
    %1703 = vmatprep.subr.mxu0 0.0
    %1704 = vmatpush1.msra.mxu0 0.0
    %1705 = vmatprep.subr.mxu0 0.0
    %1706 = vmatpush1.msra.mxu0 0.0
    %1707 = vmatprep.subr.mxu0 0.0
    %1708 = vmatpush1.msra.mxu0 0.0
    %1709 = vmatprep.subr.mxu0 0.0
    %1710 = vmatpush1.msra.mxu0 0.0
    %1711 = vmatprep.subr.mxu0 0.0
    %1712 = vmatpush1.msra.mxu0 %v1673
    %1713 = vmatprep.subr.mxu0 0.0
    %1714 = vmatpush1.msra.mxu0 %v1672
    %1715 = vmatprep.subr.mxu0 0.0
    %1716 = vmatpush1.msra.mxu0 %v1671
    %1717 = vmatprep.subr.mxu0 0.0
    %1718 = vmatpush1.msra.mxu0 %v1670
    %1719 = vmatprep.subr.mxu0 0.0
    %1720 = vmatpush2.msra.mxu0 0.0
    %1721 = vmatprep.subr.mxu0 0.0
    %1722 = vmatpush2.msra.mxu0 0.0
    %1723 = vmatprep.subr.mxu0 0.0
    %1724 = vmatpush2.msra.mxu0 0.0
    %1725 = vmatprep.subr.mxu0 0.0
    %1726 = vmatpush2.msra.mxu0 0.0
    %1727 = vmatprep.subr.mxu0 0.0
    %1728 = vmatpush2.msra.mxu0 0.0
    %1729 = vmatprep.subr.mxu0 0.0
    %1730 = vmatpush2.msra.mxu0 0.0
    %1731 = vmatprep.subr.mxu0 0.0
    %1732 = vmatpush2.msra.mxu0 0.0
    %1733 = vmatprep.subr.mxu0 0.0
    %1734 = vmatpush2.msra.mxu0 0.0
    %1735 = vmatprep.subr.mxu0 0.0
    %1736 = vmatpush2.msra.mxu0 0.0
    %1737 = vmatprep.subr.mxu0 0.0
    %1738 = vmatpush2.msra.mxu0 0.0
    %1739 = vmatprep.subr.mxu0 0.0
    %1740 = vmatpush2.msra.mxu0 0.0
    %1741 = vmatprep.subr.mxu0 0.0
    %1742 = vmatpush2.msra.mxu0 0.0
    %1743 = vmatprep.subr.mxu0 0.0
    %1744 = vmatpush2.msra.mxu0 0.0
    %1745 = vmatprep.subr.mxu0 0.0
    %1746 = vmatpush2.msra.mxu0 0.0
    %1747 = vmatprep.subr.mxu0 0.0
    %1748 = vmatpush2.msra.mxu0 0.0
    %1749 = vmatprep.subr.mxu0 0.0
    %1750 = vmatpush2.msra.mxu0 0.0
    %1751 = vmatprep.mubr.f32.mxu0 0.0
    %1752 = vmatmul.mubr.f32.gmra.mxu0 %v1682
    %v1753 = vpop.f32.mrf.mxu0
    %v1754 = vadd.f32 %v1679, %v1753
    %v1755 = vpop.f32.mrf.mxu0
    %1756 = vmatprep.mubr.f32.mxu0 0.0
    %1757 = vmatmul.mubr.f32.gmra.mxu0 %v1685
    %v1758 = vpop.f32.mrf.mxu0
    %v1759 = vadd.f32 %v1679, %v1758
    %v1760 = vpop.f32.mrf.mxu0
    %1761 = vdwg.mxu0
    %v1762 = vmul.f32 %v1754, 0.5
    %v1763 = vmul.f32 %v1759, 0.5
    %v1764 = vmul.f32 %v1754, 0.70710677
    %v1765 = vmul.f32 %v1759, 0.70710677
    %v1766 = vand.u32 2147483647, %v1764
    %v1767 = vand.u32 2147483647, %v1765
    %v1768 = vmul.f32 %v1766, 0.3275911
    %v1769 = vmul.f32 %v1767, 0.3275911
    %v1770 = vadd.f32 %v1768, 1.0
    %v1771 = vadd.f32 %v1769, 1.0
    %v1772 = vrcp.pop %v1770
    %v1773 = vmul.f32 1.0, %v1772
    %v1774 = vrcp.pop %v1771
    %v1775 = vmul.f32 1.0, %v1774
    %v1776 = vmul.f32 %v1773, 1.0614054
    %v1777 = vmul.f32 %v1775, 1.0614054
    %v1778 = vadd.f32 %v1776, -1.4531521
    %v1779 = vadd.f32 %v1777, -1.4531521
    %v1780 = vmul.f32 %v1778, %v1773
    %v1781 = vmul.f32 %v1779, %v1775
    %v1782 = vadd.f32 %v1780, 1.4214138
    %v1783 = vadd.f32 %v1781, 1.4214138
    %v1784 = vmul.f32 %v1782, %v1773
    %v1785 = vmul.f32 %v1783, %v1775
    %v1786 = vadd.f32 %v1784, -0.28449672
    %v1787 = vadd.f32 %v1785, -0.28449672
    %v1788 = vmul.f32 %v1786, %v1773
    %v1789 = vmul.f32 %v1787, %v1775
    %v1790 = vadd.f32 %v1788, 0.2548296
    %v1791 = vadd.f32 %v1789, 0.2548296
    %v1792 = vmul.f32 %v1790, %v1773
    %v1793 = vmul.f32 %v1791, %v1775
    %v1794 = vsub.f32 0.0, %v1766
    %v1795 = vsub.f32 0.0, %v1767
    %v1796 = vmul.f32 %v1794, %v1766
    %v1797 = vmul.f32 %v1795, %v1767
    %v1798 = vmul.f32 %v1796, 1.442695
    %v1799 = vpow.pop %v1798
    %v1800 = vmul.f32 %v1797, 1.442695
    %v1801 = vpow.pop %v1800
    %v1802 = vmul.f32 %v1792, %v1799
    %v1803 = vmul.f32 %v1793, %v1801
    %v1804 = vsub.f32 1.0, %v1802
    %v1805 = vsub.f32 1.0, %v1803
    %vm1806 = vcmp.ge.f32.partialorder %v1764, 0.0
    %vm1807 = vcmp.ge.f32.partialorder %v1765, 0.0
    %v1808 = vsub.f32 0.0, %v1804
    %v1809 = vsub.f32 0.0, %v1805
    %v1810 = vsel %vm1806, %v1804, %v1808
    %v1811 = vsel %vm1807, %v1805, %v1809
    %v1812 = vadd.f32 %v1810, 1.0
    %v1813 = vadd.f32 %v1811, 1.0
    %v1814 = vmul.f32 %v1762, %v1812
    %v1815 = vmul.f32 %v1763, %v1813
    %v1816 = vld [vmem:[%s9] sm:$0xff]
    %v1817 = vld [vmem:[%s9 + $0x8] sm:$0xff]
    %v1818 = vld [vmem:[%s9 + $0x10] sm:$0xff]
    %v1819 = vld [vmem:[%s9 + $0x18] sm:$0xff]
    %v1820 = vld [vmem:[%s9 + $0x20] sm:$0xff]
    %v1821 = vld [vmem:[%s9 + $0x28] sm:$0xff]
    %v1822 = vld [vmem:[%s9 + $0x30] sm:$0xff]
    %v1823 = vld [vmem:[%s9 + $0x38] sm:$0xff]
    %v1824 = vld [vmem:[%s9 + $0x40] sm:$0xff]
    %v1825 = vld [vmem:[%s9 + $0x48] sm:$0xff]
    %v1826 = vld [vmem:[%s9 + $0x50] sm:$0xff]
    %v1827 = vld [vmem:[%s9 + $0x58] sm:$0xff]
    %v1828 = vld [vmem:[%s9 + $0x60] sm:$0xff]
    %v1829 = vld [vmem:[%s9 + $0x68] sm:$0xff]
    %v1830 = vld [vmem:[%s9 + $0x70] sm:$0xff]
    %v1831 = vld [vmem:[%s9 + $0x78] sm:$0xff]
    %v1832 = vld [vmem:[%s10] sm:$0x1]
    %v1834 = vlaneseq
    %v1835 = vshrl.u32 %v1834, 7
    %v1836 = vsub.s32 0, %v1835
    %v1837 = vrot.slane %v1832, %v1836
    %1839 = vmatprep.subr.mxu0 0.0
    %1840 = vmatpush1.msra.mxu0 %v1831
    %1841 = vmatprep.subr.mxu0 0.0
    %1842 = vmatpush1.msra.mxu0 %v1830
    %1843 = vmatprep.subr.mxu0 0.0
    %1844 = vmatpush1.msra.mxu0 %v1829
    %1845 = vmatprep.subr.mxu0 0.0
    %1846 = vmatpush1.msra.mxu0 %v1828
    %1847 = vmatprep.subr.mxu0 0.0
    %1848 = vmatpush1.msra.mxu0 %v1827
    %1849 = vmatprep.subr.mxu0 0.0
    %1850 = vmatpush1.msra.mxu0 %v1826
    %1851 = vmatprep.subr.mxu0 0.0
    %1852 = vmatpush1.msra.mxu0 %v1825
    %1853 = vmatprep.subr.mxu0 0.0
    %1854 = vmatpush1.msra.mxu0 %v1824
    %1855 = vmatprep.subr.mxu0 0.0
    %1856 = vmatpush1.msra.mxu0 %v1823
    %1857 = vmatprep.subr.mxu0 0.0
    %1858 = vmatpush1.msra.mxu0 %v1822
    %1859 = vmatprep.subr.mxu0 0.0
    %1860 = vmatpush1.msra.mxu0 %v1821
    %1861 = vmatprep.subr.mxu0 0.0
    %1862 = vmatpush1.msra.mxu0 %v1820
    %1863 = vmatprep.subr.mxu0 0.0
    %1864 = vmatpush1.msra.mxu0 %v1819
    %1865 = vmatprep.subr.mxu0 0.0
    %1866 = vmatpush1.msra.mxu0 %v1818
    %1867 = vmatprep.subr.mxu0 0.0
    %1868 = vmatpush1.msra.mxu0 %v1817
    %1869 = vmatprep.subr.mxu0 0.0
    %1870 = vmatpush1.msra.mxu0 %v1816
    %1871 = vmatprep.subr.mxu0 0.0
    %1872 = vmatpush2.msra.mxu0 0.0
    %1873 = vmatprep.subr.mxu0 0.0
    %1874 = vmatpush2.msra.mxu0 0.0
    %1875 = vmatprep.subr.mxu0 0.0
    %1876 = vmatpush2.msra.mxu0 0.0
    %1877 = vmatprep.subr.mxu0 0.0
    %1878 = vmatpush2.msra.mxu0 0.0
    %1879 = vmatprep.subr.mxu0 0.0
    %1880 = vmatpush2.msra.mxu0 0.0
    %1881 = vmatprep.subr.mxu0 0.0
    %1882 = vmatpush2.msra.mxu0 0.0
    %1883 = vmatprep.subr.mxu0 0.0
    %1884 = vmatpush2.msra.mxu0 0.0
    %1885 = vmatprep.subr.mxu0 0.0
    %1886 = vmatpush2.msra.mxu0 0.0
    %1887 = vmatprep.subr.mxu0 0.0
    %1888 = vmatpush2.msra.mxu0 0.0
    %1889 = vmatprep.subr.mxu0 0.0
    %1890 = vmatpush2.msra.mxu0 0.0
    %1891 = vmatprep.subr.mxu0 0.0
    %1892 = vmatpush2.msra.mxu0 0.0
    %1893 = vmatprep.subr.mxu0 0.0
    %1894 = vmatpush2.msra.mxu0 0.0
    %1895 = vmatprep.subr.mxu0 0.0
    %1896 = vmatpush2.msra.mxu0 0.0
    %1897 = vmatprep.subr.mxu0 0.0
    %1898 = vmatpush2.msra.mxu0 0.0
    %1899 = vmatprep.subr.mxu0 0.0
    %1900 = vmatpush2.msra.mxu0 0.0
    %1901 = vmatprep.subr.mxu0 0.0
    %1902 = vmatpush2.msra.mxu0 0.0
    %1903 = vmatprep.mubr.f32.mxu0 0.0
    %1904 = vmatmul.mubr.f32.gmra.mxu0 %v1814
    %v1905 = vpop.f32.mrf.mxu0
    %v1906 = vadd.f32 %v1837, %v1905
    %v1907 = vpop.f32.mrf.mxu0
    %1908 = vmatprep.mubr.f32.mxu0 0.0
    %1909 = vmatmul.mubr.f32.gmra.mxu0 %v1815
    %v1910 = vpop.f32.mrf.mxu0
    %v1911 = vadd.f32 %v1837, %v1910
    %v1912 = vpop.f32.mrf.mxu0
    %1913 = vdwg.mxu0
    %v1914 = vadd.f32 %v1906, %v1668
    %v1915 = vadd.f32 %v1911, %v1669
    %v1916 = vsel %vm62, %v1914, 0.0
    %1917 = vadd.xlane.f32.xlu0 %v1916
    %v1918 = vpop.xlane.xlu0 %1917
    %v1919 = vsel %vm62, %v1915, 0.0
    %1920 = vadd.xlane.f32.xlu0 %v1919
    %v1921 = vpop.xlane.xlu0 %1920
    %v1922 = vmul.f32 %v1918, %v1631
    %v1923 = vmul.f32 %v1921, %v1631
    %v1924 = vsub.f32 %v1914, %v1922
    %v1925 = vsub.f32 %v1915, %v1923
    %v1926 = vmul.f32 %v1924, %v1924
    %v1927 = vmul.f32 %v1925, %v1925
    %v1928 = vsel %vm62, %v1926, 0.0
    %1929 = vadd.xlane.f32.xlu0 %v1928
    %v1930 = vpop.xlane.xlu0 %1929
    %v1931 = vsel %vm62, %v1927, 0.0
    %1932 = vadd.xlane.f32.xlu0 %v1931
    %v1933 = vpop.xlane.xlu0 %1932
    %v1934 = vmul.f32 %v1930, %v1631
    %v1935 = vmul.f32 %v1933, %v1631
    %v1936 = vadd.f32 %v1934, 1e-06
    %v1937 = vadd.f32 %v1935, 1e-06
    %v1938 = vrsqrt.pop %v1936
    %v1939 = vrsqrt.pop %v1937
    %v1940 = vmul.f32 %v1924, %v1938
    %v1941 = vmul.f32 %v1925, %v1939
    %v1942 = vld [vmem:[%s11] sm:$0x1]
    %v1944 = vlaneseq
    %v1945 = vshrl.u32 %v1944, 7
    %v1946 = vsub.s32 0, %v1945
    %v1947 = vrot.slane %v1942, %v1946
    %v1949 = vmul.f32 %v1940, %v1947
    %v1950 = vmul.f32 %v1941, %v1947
    %v1951 = vld [vmem:[%s12] sm:$0x1]
    %v1953 = vlaneseq
    %v1954 = vshrl.u32 %v1953, 7
    %v1955 = vsub.s32 0, %v1954
    %v1956 = vrot.slane %v1951, %v1955
    %v1958 = vadd.f32 %v1949, %v1956
    %v1959 = vadd.f32 %v1950, %v1956
    %1960 = vst.msk [vmem:[#allocation2] sm:$0xff] %vm62, %v1958
    %1961 = vst.msk [vmem:[#allocation2 + $0x8] sm:$0xff] %vm62, %v1959
    // Predicated region
    $region54: #{encoder_layer_forward.1} parent=1 // pred_check
      _
    $region55: #{encoder_layer_forward.1} parent=1 // pred_check_branch
      %1963 = sbr.rel (0) target = $region57
    $region56: #{encoder_layer_forward.1} parent=1 // pred_region
      %s1965 = ssub.s32 256, 256
      %1966 = vsyncadd [#allocation3], %s1965
      %s1967 = sshll.u32 [#allocation2], 4
      %s1968 = int_to_ptr.vmem [resolvable:$true] %s1967
      %1973 = dma.vmem_to_hbm [thread:$0]  %s1968, 256, %s13, [#allocation3], 128, 128, 8
    $region57: #{encoder_layer_forward.1} parent=1 // pred_fallthru
      _
    // Predicated region
    $region58: #{encoder_layer_forward.1} parent=1 // pred_check
      _
    $region59: #{encoder_layer_forward.1} parent=1 // pred_check_branch
      %1975 = sbr.rel (0) target = $region61
    $region60: #{encoder_layer_forward.1} parent=1 // pred_region
      _
    $region61: #{encoder_layer_forward.1} parent=1 // pred_fallthru
      _
    // Predicated region
    $region62: #{encoder_layer_forward.1} parent=1 // pred_check
      _
    $region63: #{encoder_layer_forward.1} parent=1 // pred_check_branch
      %1977 = sbr.rel (0) target = $region65
    $region64: #{encoder_layer_forward.1} parent=1 // pred_region
      %s1979 = ssub.s32 256, 256
      %1980 = vsyncadd [#allocation5], %s1979
      %s1981 = sshll.u32 [#allocation4], 4
      %s1982 = int_to_ptr.vmem [resolvable:$true] %s1981
      %1987 = dma.vmem_to_hbm [thread:$0]  %s1982, 256, %s15, [#allocation5], 128, 128, 8
    $region65: #{encoder_layer_forward.1} parent=1 // pred_fallthru
      _
    // Predicated region
    $region66: #{encoder_layer_forward.1} parent=1 // pred_check
      _
    $region67: #{encoder_layer_forward.1} parent=1 // pred_check_branch
      %1989 = sbr.rel (0) target = $region69
    $region68: #{encoder_layer_forward.1} parent=1 // pred_region
      %1990 = dma.done [#allocation3], 256
    $region69: #{encoder_layer_forward.1} parent=1 // pred_fallthru
      _
    // Predicated region
    $region70: #{encoder_layer_forward.1} parent=1 // pred_check
      _
    $region71: #{encoder_layer_forward.1} parent=1 // pred_check_branch
      %1992 = sbr.rel (0) target = $region73
    $region72: #{encoder_layer_forward.1} parent=1 // pred_region
      _
    $region73: #{encoder_layer_forward.1} parent=1 // pred_fallthru
      _
    // Predicated region
    $region74: #{encoder_layer_forward.1} parent=1 // pred_check
      _
    $region75: #{encoder_layer_forward.1} parent=1 // pred_check_branch
      %1994 = sbr.rel (0) target = $region77
    $region76: #{encoder_layer_forward.1} parent=1 // pred_region
      %1995 = dma.done [#allocation5], 256
    $region77: #{encoder_layer_forward.1} parent=1 // pred_fallthru
      _
    %1996 = vsyncpa [#allocation3], 1
    %1997 = vsyncpa [#allocation5], 1

</llo_original>
